<compile_context>
chip_gen: v5e
topology: v5e:2x2
jax: 0.10.0
libtpu: 0.0.40
codegen_flags: <defaults>
</compile_context>

<pallas_src>
import functools

import jax
import jax.numpy as jnp
from jax import lax
from jax.experimental import pallas as pl
from jax.experimental.pallas import tpu as pltpu

EPS = 1e-5
LANE = 128                       # output-channel padding target (lane-dense vst)
VMEM_LIMIT = 48 * 1024 * 1024    # explicit scoped-VMEM limit (fits v7x 64 MiB)


def _round_up(x, m):
    return (x + m - 1) // m * m


def _pad_to(a, shape):
    return jnp.pad(a, [(0, s - d) for s, d in zip(shape, a.shape)])


def _pick_tile_m(m):
    """Pick an M tile minimizing padding waste; prefer >=2 tiles for megacore."""
    best = None
    for t in (512, 256, 128):
        mp = _round_up(m, t)
        key = (mp, 0 if mp // t >= 2 else 1, -t)
        if best is None or key < best[0]:
            best = (key, t, mp)
    return best[1], best[2]


# ------------------------------ Pallas kernels ------------------------------ #
def _store_stats(acc, stats_ref):
    """Pack column sum (sublane 0) and sum-of-squares (sublane 1) of the f32 tile."""
    pp = acc.shape[1]
    ps = jnp.sum(acc, axis=0, keepdims=True)            # (1, Pp)
    pss = jnp.sum(acc * acc, axis=0, keepdims=True)     # (1, Pp)
    rows = lax.broadcasted_iota(jnp.int32, (8, pp), 0)
    stats_ref[...] = jnp.where(rows == 0, ps, jnp.where(rows == 1, pss, 0.0))


def _gemm_stats_kernel(p_ref, w_ref, c_ref, stats_ref):
    """c = p @ w (full K, resident weight); emits per-M-tile BN partials."""
    acc = jnp.dot(p_ref[...], w_ref[...], preferred_element_type=jnp.float32)
    c_ref[...] = acc.astype(c_ref.dtype)
    _store_stats(acc, stats_ref)


def _bn_relu_lhs(p_ref, s_ref, t_ref, *, m_valid, m_padded, tile_m):
    """Fold BN1 scale/shift + ReLU into the GEMM LHS load (f32 math, bf16 out)."""
    h = jnp.maximum(p_ref[...].astype(jnp.float32) * s_ref[...] + t_ref[...], 0.0)
    if m_valid < m_padded:  # static: only traced when M padding rows exist
        rows = (lax.broadcasted_iota(jnp.int32, h.shape, 0)
                + pl.program_id(0) * tile_m)
        h = jnp.where(rows < m_valid, h, 0.0)
    return h.astype(jnp.bfloat16)


def _gemm_bn_stats_kernel(p_ref, s_ref, t_ref, w_ref, c_ref, stats_ref,
                          *, m_valid, m_padded, tile_m):
    h = _bn_relu_lhs(p_ref, s_ref, t_ref, m_valid=m_valid,
                     m_padded=m_padded, tile_m=tile_m)
    acc = jnp.dot(h, w_ref[...], preferred_element_type=jnp.float32)
    c_ref[...] = acc.astype(c_ref.dtype)
    _store_stats(acc, stats_ref)


def _gemm_bn_stats_proj_kernel(p_ref, s_ref, t_ref, w_ref, xs_ref, wsc_ref,
                               c_ref, stats_ref, sc_ref, stats_sc_ref,
                               *, m_valid, m_padded, tile_m):
    """Conv2 GEMM (with folded BN1+ReLU) plus the fused 1x1 projection GEMM."""
    h = _bn_relu_lhs(p_ref, s_ref, t_ref, m_valid=m_valid,
                     m_padded=m_padded, tile_m=tile_m)
    acc = jnp.dot(h, w_ref[...], preferred_element_type=jnp.float32)
    c_ref[...] = acc.astype(c_ref.dtype)
    _store_stats(acc, stats_ref)

    acc_sc = jnp.dot(xs_ref[...], wsc_ref[...], preferred_element_type=jnp.float32)
    sc_ref[...] = acc_sc.astype(sc_ref.dtype)
    _store_stats(acc_sc, stats_sc_ref)


def _bn_apply_kernel(*refs, residual_has_bn):
    """(c*scale + shift) + residual (optionally with its own scale/shift) -> ReLU."""
    if residual_has_bn:
        c_ref, s_ref, t_ref, r_ref, rs_ref, rt_ref, o_ref = refs
    else:
        c_ref, s_ref, t_ref, r_ref, o_ref = refs
    h = c_ref[...].astype(jnp.float32) * s_ref[...] + t_ref[...]
    r = r_ref[...].astype(jnp.float32)
    if residual_has_bn:
        r = r * rs_ref[...] + rt_ref[...]
    o_ref[...] = jnp.maximum(h + r, 0.0).astype(o_ref.dtype)


# ----------------------------- pallas_call glue ------------------------------ #
def _conv_gemm(p, w, *, tile_m, scale=None, shift=None, xs=None, wsc=None,
               m_valid=None):
    """Tiled full-K conv GEMM (+ optional BN1 fold and fused projection GEMM)."""
    Mp, K = p.shape
    Pp = w.shape[1]
    n_m = Mp // tile_m

    in_specs = [pl.BlockSpec((tile_m, K), lambda i: (i, 0))]   # streamed patches
    args = [p]
    if scale is not None:
        in_specs += [pl.BlockSpec((1, K), lambda i: (0, 0)),
                     pl.BlockSpec((1, K), lambda i: (0, 0))]
        args += [scale, shift]
    in_specs += [pl.BlockSpec((K, Pp), lambda i: (0, 0))]      # resident weight
    args += [w]

    out_shape = [jax.ShapeDtypeStruct((Mp, Pp), jnp.bfloat16),     # conv output
                 jax.ShapeDtypeStruct((n_m * 8, Pp), jnp.float32)]  # sum / sumsq
    out_specs = [pl.BlockSpec((tile_m, Pp), lambda i: (i, 0)),
                 pl.BlockSpec((8, Pp), lambda i: (i, 0))]

    if xs is not None:
        Ks = xs.shape[1]
        in_specs += [pl.BlockSpec((tile_m, Ks), lambda i: (i, 0)),
                     pl.BlockSpec((Ks, Pp), lambda i: (0, 0))]
        args += [xs, wsc]
        out_shape += [jax.ShapeDtypeStruct((Mp, Pp), jnp.bfloat16),
                      jax.ShapeDtypeStruct((n_m * 8, Pp), jnp.float32)]
        out_specs += [pl.BlockSpec((tile_m, Pp), lambda i: (i, 0)),
                      pl.BlockSpec((8, Pp), lambda i: (i, 0))]

    if scale is None:
        kernel = _gemm_stats_kernel
    elif xs is None:
        kernel = functools.partial(_gemm_bn_stats_kernel, m_valid=m_valid,
                                   m_padded=Mp, tile_m=tile_m)
    else:
        kernel = functools.partial(_gemm_bn_stats_proj_kernel, m_valid=m_valid,
                                   m_padded=Mp, tile_m=tile_m)

    return pl.pallas_call(
        kernel,
        out_shape=tuple(out_shape),
        grid_spec=pltpu.PrefetchScalarGridSpec(
            num_scalar_prefetch=0,
            grid=(n_m,),
            in_specs=in_specs,
            out_specs=tuple(out_specs),
        ),
        compiler_params=pltpu.CompilerParams(
            dimension_semantics=("parallel",),
            vmem_limit_bytes=VMEM_LIMIT,
        ),
    )(*args)


def _bn_apply(c, scale, shift, residual, res_scale=None, res_shift=None,
              *, tile_m, out_dtype):
    """Tiled fused BN-apply + residual add + ReLU."""
    Mp, Pp = c.shape
    n_m = Mp // tile_m
    tile_spec = pl.BlockSpec((tile_m, Pp), lambda i: (i, 0))
    vec_spec = pl.BlockSpec((1, Pp), lambda i: (0, 0))
    in_specs = [tile_spec, vec_spec, vec_spec, tile_spec]
    args = [c, scale, shift, residual]
    if res_scale is not None:
        in_specs += [vec_spec, vec_spec]
        args += [res_scale, res_shift]

    kernel = functools.partial(_bn_apply_kernel,
                               residual_has_bn=res_scale is not None)
    return pl.pallas_call(
        kernel,
        out_shape=jax.ShapeDtypeStruct((Mp, Pp), out_dtype),
        grid_spec=pltpu.PrefetchScalarGridSpec(
            num_scalar_prefetch=0,
            grid=(n_m,),
            in_specs=in_specs,
            out_specs=tile_spec,
        ),
        compiler_params=pltpu.CompilerParams(
            dimension_semantics=("parallel",),
            vmem_limit_bytes=VMEM_LIMIT,
        ),
    )(*args)


def _finalize_bn(stats, m_count, gamma, beta):
    """Per-M-tile (sum, sumsq) partials -> fused f32 scale/shift vectors."""
    # NOTE: E[x^2]-E[x]^2 in f32; for very large M a Welford/shifted-sum
    # accumulation would further limit cancellation.
    pp = stats.shape[-1]
    st = stats.reshape(-1, 8, pp)
    total = jnp.sum(st[:, 0, :], axis=0)
    total_sq = jnp.sum(st[:, 1, :], axis=0)
    mu = total / m_count
    var = jnp.maximum(total_sq / m_count - mu * mu, 0.0)   # biased (training BN)
    scale = gamma * lax.rsqrt(var + EPS)
    shift = beta - mu * scale
    return scale.reshape(1, pp), shift.reshape(1, pp)


def _im2col(xp, ksize, stride):
    """Pre-padded (N,Hp,Wp,C) -> (N*Ho*Wo, ksize*ksize*C) patches, channel fastest."""
    N, Hp, Wp, C = xp.shape
    Ho = (Hp - ksize) // stride + 1
    Wo = (Wp - ksize) // stride + 1
    cols = []
    for di in range(ksize):
        for dj in range(ksize):
            cols.append(xp[:, di:di + (Ho - 1) * stride + 1:stride,
                           dj:dj + (Wo - 1) * stride + 1:stride, :])
    patches = jnp.stack(cols, axis=3)                      # (N, Ho, Wo, k*k, C)
    return patches.reshape(N * Ho * Wo, ksize * ksize * C)


@functools.partial(jax.jit, static_argnums=(2,))
def basic_block_forward(x_nhwc, params, stride):
    """BasicBlock forward: (N, H, W, Cin) -> (N, Ho, Wo, planes)."""
    N, H, W, Cin = x_nhwc.shape
    planes = params["w1"].shape[-1]
    Pp = _round_up(planes, LANE)

    Ho = (H + 2 - 3) // stride + 1
    Wo = (W + 2 - 3) // stride + 1
    M = N * Ho * Wo
    tile_m, Mp = _pick_tile_m(M)

    x_bf16 = x_nhwc.astype(jnp.bfloat16)                   # cast before im2col

    # ---- conv1 (3x3, stride, pad 1) as full-K GEMM + BN1 partial stats ----
    xp1 = jnp.pad(x_bf16, ((0, 0), (1, 1), (1, 1), (0, 0)))
    p1 = _pad_to(_im2col(xp1, 3, stride), (Mp, 9 * Cin))
    w1 = _pad_to(params["w1"].reshape(9 * Cin, planes),
                 (9 * Cin, Pp)).astype(jnp.bfloat16)
    c1, st1 = _conv_gemm(p1, w1, tile_m=tile_m)
    s1, t1 = _finalize_bn(st1, M, _pad_to(params["g1"], (Pp,)),
                          _pad_to(params["b1"], (Pp,)))

    # ---- conv2 (3x3, stride 1, pad 1) with BN1+ReLU folded into its LHS ----
    # Patches are built from the *pre-BN* conv1 output; image borders are filled
    # with -shift/scale so relu(border*scale + shift) == 0 (zero padding of h1).
    s1v = s1[0, :planes]
    t1v = t1[0, :planes]
    pad_val = (-t1v / jnp.where(s1v == 0.0, 1.0, s1v)).astype(jnp.bfloat16)
    c1_img = c1[:M, :planes].reshape(N, Ho, Wo, planes)
    xp2 = jnp.broadcast_to(pad_val, (N, Ho + 2, Wo + 2, planes))
    xp2 = xp2.at[:, 1:-1, 1:-1, :].set(c1_img)
    p2 = _pad_to(_im2col(xp2, 3, 1), (Mp, 9 * planes))
    w2 = _pad_to(params["w2"].reshape(9 * planes, planes),
                 (9 * planes, Pp)).astype(jnp.bfloat16)
    s_vec = jnp.tile(s1v, 9).reshape(1, 9 * planes)        # per-K-column scale
    t_vec = jnp.tile(t1v, 9).reshape(1, 9 * planes)        # per-K-column shift
    g2 = _pad_to(params["g2"], (Pp,))
    b2 = _pad_to(params["b2"], (Pp,))

    if stride != 1:
        # Projection shortcut: 1x1 stride-s conv + BN, fused into the conv2 call.
        xs = _pad_to(x_bf16[:, ::stride, ::stride, :].reshape(M, Cin), (Mp, Cin))
        wsc = _pad_to(params["wsc"].reshape(Cin, planes),
                      (Cin, Pp)).astype(jnp.bfloat16)
        c2, st2, sc, stsc = _conv_gemm(p2, w2, tile_m=tile_m, scale=s_vec,
                                       shift=t_vec, xs=xs, wsc=wsc, m_valid=M)
        s2, t2 = _finalize_bn(st2, M, g2, b2)
        ssc, tsc = _finalize_bn(stsc, M, _pad_to(params["gsc"], (Pp,)),
                                _pad_to(params["bsc"], (Pp,)))
        out = _bn_apply(c2, s2, t2, sc, ssc, tsc, tile_m=tile_m,
                        out_dtype=jnp.float32)
    else:
        assert Cin == planes, "identity shortcut requires in_planes == planes"
        resid = _pad_to(x_nhwc.reshape(M, Cin), (Mp, Pp))  # exact f32 residual
        c2, st2 = _conv_gemm(p2, w2, tile_m=tile_m, scale=s_vec, shift=t_vec,
                             m_valid=M)
        s2, t2 = _finalize_bn(st2, M, g2, b2)
        out = _bn_apply(c2, s2, t2, resid, tile_m=tile_m, out_dtype=jnp.float32)

    return out[:M, :planes].reshape(N, Ho, Wo, planes)


# ------------------------------- JAX reference ------------------------------- #
def _reference(x_nhwc, params, stride):
    def conv(x, w, s, padding):
        return lax.conv_general_dilated(
            x, w, (s, s), padding, dimension_numbers=("NHWC", "HWIO", "NHWC"))

    def bn(x, g, b):
        mu = jnp.mean(x, axis=(0, 1, 2), keepdims=True)
        var = jnp.mean((x - mu) ** 2, axis=(0, 1, 2), keepdims=True)
        return (x - mu) * lax.rsqrt(var + EPS) * g + b

    out = jax.nn.relu(bn(conv(x_nhwc, params["w1"], stride, ((1, 1), (1, 1))),
                         params["g1"], params["b1"]))
    out = bn(conv(out, params["w2"], 1, ((1, 1), (1, 1))),
             params["g2"], params["b2"])
    if stride != 1:
        sc = bn(conv(x_nhwc, params["wsc"], stride, "VALID"),
                params["gsc"], params["bsc"])
    else:
        sc = x_nhwc
    return jax.nn.relu(out + sc)


# ------------------------------------ main ------------------------------------ #
def _make_params(key, cin, planes, stride):
    ks = jax.random.split(key, 9)
    p = dict(
        w1=0.2 * jax.random.normal(ks[0], (3, 3, cin, planes), jnp.float32),
        w2=0.2 * jax.random.normal(ks[1], (3, 3, planes, planes), jnp.float32),
        g1=1.0 + 0.1 * jax.random.normal(ks[2], (planes,), jnp.float32),
        b1=0.1 * jax.random.normal(ks[3], (planes,), jnp.float32),
        g2=1.0 + 0.1 * jax.random.normal(ks[4], (planes,), jnp.float32),
        b2=0.1 * jax.random.normal(ks[5], (planes,), jnp.float32),
    )
    if stride != 1:
        p.update(
            wsc=0.2 * jax.random.normal(ks[6], (1, 1, cin, planes), jnp.float32),
            gsc=1.0 + 0.1 * jax.random.normal(ks[7], (planes,), jnp.float32),
            bsc=0.1 * jax.random.normal(ks[8], (planes,), jnp.float32),
        )
    return p


if __name__ == "__main__":
    key = jax.random.PRNGKey(0)
    configs = [
        dict(N=2, Cin=4, H=16, W=16, planes=8, stride=2),   # projection shortcut
        dict(N=2, Cin=8, H=16, W=16, planes=8, stride=1),   # identity shortcut
    ]
    for cfg in configs:
        key, kx, kp = jax.random.split(key, 3)
        x_nchw = jax.random.normal(
            kx, (cfg["N"], cfg["Cin"], cfg["H"], cfg["W"]), jnp.float32)
        params = _make_params(kp, cfg["Cin"], cfg["planes"], cfg["stride"])

        x_nhwc = jnp.transpose(x_nchw, (0, 2, 3, 1))
        out_nhwc = basic_block_forward(x_nhwc, params, cfg["stride"])
        out_nchw = jnp.transpose(out_nhwc, (0, 3, 1, 2))    # back to NCHW
        out_nchw = jax.block_until_ready(out_nchw)

        ref_nchw = jnp.transpose(_reference(x_nhwc, params, cfg["stride"]),
                                 (0, 3, 1, 2))
        ho = (cfg["H"] + 2 - 3) // cfg["stride"] + 1
        assert out_nchw.shape == (cfg["N"], cfg["planes"], ho, ho), out_nchw.shape
        max_err = float(jnp.max(jnp.abs(out_nchw - ref_nchw)))
        # bf16 MXU operands + bf16 conv-output storage vs. full-f32 XLA reference.
        assert max_err < 6e-2, f"stride={cfg['stride']}: max abs err {max_err}"

    print("KERNEL_OK")
</pallas_src>

<mosaic_0001>
module attributes {stable_mosaic.version = 11 : i64} {
  func.func @_gemm_stats_kernel(%arg0: i32, %arg1: memref<128x36xbf16, #tpu.memory_space<vmem>>, %arg2: memref<36x128xbf16, #tpu.memory_space<vmem>>, %arg3: memref<128x128xbf16, #tpu.memory_space<vmem>>, %arg4: memref<8x128xf32, #tpu.memory_space<vmem>>) attributes {dimension_semantics = [#tpu.dimension_semantics<parallel>], iteration_bounds = array<i64: 1>, scalar_prefetch = 0 : i64, scratch_operands = 0 : i64, tpu.core_type = #tpu.core_type<tc>, window_params = [{transform_indices = @transform_0, window_bounds = array<i64: 128, 36>}, {pipeline_mode = #tpu.pipeline_mode<synchronous>, transform_indices = @transform_1, window_bounds = array<i64: 36, 128>}, {transform_indices = @transform_2, window_bounds = array<i64: 128, 128>}, {transform_indices = @transform_3, window_bounds = array<i64: 8, 128>}]} {
    %c0 = arith.constant 0 : index
    %c0_0 = arith.constant 0 : index
    %0 = vector.load %arg1[%c0, %c0_0] : memref<128x36xbf16, #tpu.memory_space<vmem>>, vector<128x36xbf16>
    %c0_1 = arith.constant 0 : index
    %c0_2 = arith.constant 0 : index
    %1 = vector.load %arg2[%c0_1, %c0_2] : memref<36x128xbf16, #tpu.memory_space<vmem>>, vector<36x128xbf16>
    %cst = arith.constant dense<0.000000e+00> : vector<128x128xf32>
    %2 = tpu.matmul %0, %1, %cst {dimension_numbers = #tpu.dot_dimension_numbers<[1], [0], [0], [1], [0, 0, 1, 1], [], []>} : vector<128x36xbf16>, vector<36x128xbf16>, vector<128x128xf32> -> vector<128x128xf32>
    %3 = arith.truncf %2 : vector<128x128xf32> to vector<128x128xbf16>
    %c0_3 = arith.constant 0 : index
    %c0_4 = arith.constant 0 : index
    %4 = vector.load %arg3[%c0_3, %c0_4] : memref<128x128xbf16, #tpu.memory_space<vmem>>, vector<128x128xbf16>
    tpu.vector_store %arg3[%c0_3, %c0_4], %3 {strides = array<i32>} : memref<128x128xbf16, #tpu.memory_space<vmem>>, vector<128x128xbf16>,
    %cst_5 = arith.constant dense<0.000000e+00> : vector<128xf32>
    %5 = vector.multi_reduction <add>, %2, %cst_5 [0] : vector<128x128xf32> to vector<128xf32>
    %6 = vector.shape_cast %5 : vector<128xf32> to vector<1x128xf32>
    %7 = arith.mulf %2, %2 : vector<128x128xf32>
    %cst_6 = arith.constant dense<0.000000e+00> : vector<128xf32>
    %8 = vector.multi_reduction <add>, %7, %cst_6 [0] : vector<128x128xf32> to vector<128xf32>
    %9 = vector.shape_cast %8 : vector<128xf32> to vector<1x128xf32>
    %10 = tpu.iota {dimensions = array<i32: 0>} : vector<8x128xi32>
    %c0_i32 = arith.constant 0 : i32
    %11 = vector.broadcast %c0_i32 : i32 to vector<8x128xi32>
    %12 = arith.cmpi eq, %10, %11 : vector<8x128xi32>
    %c1_i32 = arith.constant 1 : i32
    %13 = vector.broadcast %c1_i32 : i32 to vector<8x128xi32>
    %14 = arith.cmpi eq, %10, %13 : vector<8x128xi32>
    %cst_7 = arith.constant 0.000000e+00 : f32
    %15 = vector.shape_cast %9 : vector<1x128xf32> to vector<1x128xf32>
    %16 = vector.broadcast %15 : vector<1x128xf32> to vector<8x128xf32>
    %17 = vector.broadcast %cst_7 : f32 to vector<8x128xf32>
    %18 = arith.select %14, %16, %17 : vector<8x128xi1>, vector<8x128xf32>
    %19 = vector.shape_cast %6 : vector<1x128xf32> to vector<1x128xf32>
    %20 = vector.broadcast %19 : vector<1x128xf32> to vector<8x128xf32>
    %21 = arith.select %12, %20, %18 : vector<8x128xi1>, vector<8x128xf32>
    %c0_8 = arith.constant 0 : index
    %c0_9 = arith.constant 0 : index
    %22 = vector.load %arg4[%c0_8, %c0_9] : memref<8x128xf32, #tpu.memory_space<vmem>>, vector<8x128xf32>
    tpu.vector_store %arg4[%c0_8, %c0_9], %21 {strides = array<i32>} : memref<8x128xf32, #tpu.memory_space<vmem>>, vector<8x128xf32>,
    return
  }
  func.func @transform_0(%arg0: i32) -> (i32, i32) {
    %c0_i32 = arith.constant 0 : i32
    %c0_i32_0 = arith.constant 0 : i32
    return %arg0, %c0_i32 : i32, i32
  }
  func.func @transform_1(%arg0: i32) -> (i32, i32) {
    %c0_i32 = arith.constant 0 : i32
    %c0_i32_0 = arith.constant 0 : i32
    %c0_i32_1 = arith.constant 0 : i32
    return %c0_i32, %c0_i32_0 : i32, i32
  }
  func.func @transform_2(%arg0: i32) -> (i32, i32) {
    %c0_i32 = arith.constant 0 : i32
    %c0_i32_0 = arith.constant 0 : i32
    return %arg0, %c0_i32 : i32, i32
  }
  func.func @transform_3(%arg0: i32) -> (i32, i32) {
    %c0_i32 = arith.constant 0 : i32
    %c0_i32_0 = arith.constant 0 : i32
    return %arg0, %c0_i32 : i32, i32
  }
}

module attributes {stable_mosaic.version = 11 : i64} {
  func.func @_gemm_bn_stats_proj_kernel(%arg0: i32, %arg1: memref<128x72xbf16, #tpu.memory_space<vmem>>, %arg2: memref<1x72xf32, #tpu.memory_space<vmem>>, %arg3: memref<1x72xf32, #tpu.memory_space<vmem>>, %arg4: memref<72x128xbf16, #tpu.memory_space<vmem>>, %arg5: memref<128x4xbf16, #tpu.memory_space<vmem>>, %arg6: memref<4x128xbf16, #tpu.memory_space<vmem>>, %arg7: memref<128x128xbf16, #tpu.memory_space<vmem>>, %arg8: memref<8x128xf32, #tpu.memory_space<vmem>>, %arg9: memref<128x128xbf16, #tpu.memory_space<vmem>>, %arg10: memref<8x128xf32, #tpu.memory_space<vmem>>) attributes {dimension_semantics = [#tpu.dimension_semantics<parallel>], iteration_bounds = array<i64: 1>, scalar_prefetch = 0 : i64, scratch_operands = 0 : i64, tpu.core_type = #tpu.core_type<tc>, window_params = [{transform_indices = @transform_0, window_bounds = array<i64: 128, 72>}, {pipeline_mode = #tpu.pipeline_mode<synchronous>, transform_indices = @transform_1, window_bounds = array<i64: 1, 72>}, {pipeline_mode = #tpu.pipeline_mode<synchronous>, transform_indices = @transform_2, window_bounds = array<i64: 1, 72>}, {pipeline_mode = #tpu.pipeline_mode<synchronous>, transform_indices = @transform_3, window_bounds = array<i64: 72, 128>}, {transform_indices = @transform_4, window_bounds = array<i64: 128, 4>}, {pipeline_mode = #tpu.pipeline_mode<synchronous>, transform_indices = @transform_5, window_bounds = array<i64: 4, 128>}, {transform_indices = @transform_6, window_bounds = array<i64: 128, 128>}, {transform_indices = @transform_7, window_bounds = array<i64: 8, 128>}, {transform_indices = @transform_8, window_bounds = array<i64: 128, 128>}, {transform_indices = @transform_9, window_bounds = array<i64: 8, 128>}]} {
    %c0 = arith.constant 0 : index
    %c0_0 = arith.constant 0 : index
    %0 = vector.load %arg1[%c0, %c0_0] : memref<128x72xbf16, #tpu.memory_space<vmem>>, vector<128x72xbf16>
    %1 = arith.extf %0 : vector<128x72xbf16> to vector<128x72xf32>
    %c0_1 = arith.constant 0 : index
    %c0_2 = arith.constant 0 : index
    %2 = vector.load %arg2[%c0_1, %c0_2] : memref<1x72xf32, #tpu.memory_space<vmem>>, vector<1x72xf32>
    %3 = vector.broadcast %2 : vector<1x72xf32> to vector<128x72xf32>
    %4 = arith.mulf %1, %3 : vector<128x72xf32>
    %c0_3 = arith.constant 0 : index
    %c0_4 = arith.constant 0 : index
    %5 = vector.load %arg3[%c0_3, %c0_4] : memref<1x72xf32, #tpu.memory_space<vmem>>, vector<1x72xf32>
    %6 = vector.broadcast %5 : vector<1x72xf32> to vector<128x72xf32>
    %7 = arith.addf %4, %6 : vector<128x72xf32>
    %cst = arith.constant 0.000000e+00 : f32
    %8 = vector.broadcast %cst : f32 to vector<128x72xf32>
    %9 = arith.maximumf %7, %8 : vector<128x72xf32>
    %10 = arith.truncf %9 : vector<128x72xf32> to vector<128x72xbf16>
    %c0_5 = arith.constant 0 : index
    %c0_6 = arith.constant 0 : index
    %11 = vector.load %arg4[%c0_5, %c0_6] : memref<72x128xbf16, #tpu.memory_space<vmem>>, vector<72x128xbf16>
    %cst_7 = arith.constant dense<0.000000e+00> : vector<128x128xf32>
    %12 = tpu.matmul %10, %11, %cst_7 {dimension_numbers = #tpu.dot_dimension_numbers<[1], [0], [0], [1], [0, 0, 1, 1], [], []>} : vector<128x72xbf16>, vector<72x128xbf16>, vector<128x128xf32> -> vector<128x128xf32>
    %13 = arith.truncf %12 : vector<128x128xf32> to vector<128x128xbf16>
    %c0_8 = arith.constant 0 : index
    %c0_9 = arith.constant 0 : index
    %14 = vector.load %arg7[%c0_8, %c0_9] : memref<128x128xbf16, #tpu.memory_space<vmem>>, vector<128x128xbf16>
    tpu.vector_store %arg7[%c0_8, %c0_9], %13 {strides = array<i32>} : memref<128x128xbf16, #tpu.memory_space<vmem>>, vector<128x128xbf16>,
    %cst_10 = arith.constant dense<0.000000e+00> : vector<128xf32>
    %15 = vector.multi_reduction <add>, %12, %cst_10 [0] : vector<128x128xf32> to vector<128xf32>
    %16 = vector.shape_cast %15 : vector<128xf32> to vector<1x128xf32>
    %17 = arith.mulf %12, %12 : vector<128x128xf32>
    %cst_11 = arith.constant dense<0.000000e+00> : vector<128xf32>
    %18 = vector.multi_reduction <add>, %17, %cst_11 [0] : vector<128x128xf32> to vector<128xf32>
    %19 = vector.shape_cast %18 : vector<128xf32> to vector<1x128xf32>
    %20 = tpu.iota {dimensions = array<i32: 0>} : vector<8x128xi32>
    %c0_i32 = arith.constant 0 : i32
    %21 = vector.broadcast %c0_i32 : i32 to vector<8x128xi32>
    %22 = arith.cmpi eq, %20, %21 : vector<8x128xi32>
    %c1_i32 = arith.constant 1 : i32
    %23 = vector.broadcast %c1_i32 : i32 to vector<8x128xi32>
    %24 = arith.cmpi eq, %20, %23 : vector<8x128xi32>
    %cst_12 = arith.constant 0.000000e+00 : f32
    %25 = vector.shape_cast %19 : vector<1x128xf32> to vector<1x128xf32>
    %26 = vector.broadcast %25 : vector<1x128xf32> to vector<8x128xf32>
    %27 = vector.broadcast %cst_12 : f32 to vector<8x128xf32>
    %28 = arith.select %24, %26, %27 : vector<8x128xi1>, vector<8x128xf32>
    %29 = vector.shape_cast %16 : vector<1x128xf32> to vector<1x128xf32>
    %30 = vector.broadcast %29 : vector<1x128xf32> to vector<8x128xf32>
    %31 = arith.select %22, %30, %28 : vector<8x128xi1>, vector<8x128xf32>
    %c0_13 = arith.constant 0 : index
    %c0_14 = arith.constant 0 : index
    %32 = vector.load %arg8[%c0_13, %c0_14] : memref<8x128xf32, #tpu.memory_space<vmem>>, vector<8x128xf32>
    tpu.vector_store %arg8[%c0_13, %c0_14], %31 {strides = array<i32>} : memref<8x128xf32, #tpu.memory_space<vmem>>, vector<8x128xf32>,
    %c0_15 = arith.constant 0 : index
    %c0_16 = arith.constant 0 : index
    %33 = vector.load %arg5[%c0_15, %c0_16] : memref<128x4xbf16, #tpu.memory_space<vmem>>, vector<128x4xbf16>
    %c0_17 = arith.constant 0 : index
    %c0_18 = arith.constant 0 : index
    %34 = vector.load %arg6[%c0_17, %c0_18] : memref<4x128xbf16, #tpu.memory_space<vmem>>, vector<4x128xbf16>
    %cst_19 = arith.constant dense<0.000000e+00> : vector<128x128xf32>
    %35 = tpu.matmul %33, %34, %cst_19 {dimension_numbers = #tpu.dot_dimension_numbers<[1], [0], [0], [1], [0, 0, 1, 1], [], []>} : vector<128x4xbf16>, vector<4x128xbf16>, vector<128x128xf32> -> vector<128x128xf32>
    %36 = arith.truncf %35 : vector<128x128xf32> to vector<128x128xbf16>
    %c0_20 = arith.constant 0 : index
    %c0_21 = arith.constant 0 : index
    %37 = vector.load %arg9[%c0_20, %c0_21] : memref<128x128xbf16, #tpu.memory_space<vmem>>, vector<128x128xbf16>
    tpu.vector_store %arg9[%c0_20, %c0_21], %36 {strides = array<i32>} : memref<128x128xbf16, #tpu.memory_space<vmem>>, vector<128x128xbf16>,
    %cst_22 = arith.constant dense<0.000000e+00> : vector<128xf32>
    %38 = vector.multi_reduction <add>, %35, %cst_22 [0] : vector<128x128xf32> to vector<128xf32>
    %39 = vector.shape_cast %38 : vector<128xf32> to vector<1x128xf32>
    %40 = arith.mulf %35, %35 : vector<128x128xf32>
    %cst_23 = arith.constant dense<0.000000e+00> : vector<128xf32>
    %41 = vector.multi_reduction <add>, %40, %cst_23 [0] : vector<128x128xf32> to vector<128xf32>
    %42 = vector.shape_cast %41 : vector<128xf32> to vector<1x128xf32>
    %43 = tpu.iota {dimensions = array<i32: 0>} : vector<8x128xi32>
    %c0_i32_24 = arith.constant 0 : i32
    %44 = vector.broadcast %c0_i32_24 : i32 to vector<8x128xi32>
    %45 = arith.cmpi eq, %43, %44 : vector<8x128xi32>
    %c1_i32_25 = arith.constant 1 : i32
    %46 = vector.broadcast %c1_i32_25 : i32 to vector<8x128xi32>
    %47 = arith.cmpi eq, %43, %46 : vector<8x128xi32>
    %cst_26 = arith.constant 0.000000e+00 : f32
    %48 = vector.shape_cast %42 : vector<1x128xf32> to vector<1x128xf32>
    %49 = vector.broadcast %48 : vector<1x128xf32> to vector<8x128xf32>
    %50 = vector.broadcast %cst_26 : f32 to vector<8x128xf32>
    %51 = arith.select %47, %49, %50 : vector<8x128xi1>, vector<8x128xf32>
    %52 = vector.shape_cast %39 : vector<1x128xf32> to vector<1x128xf32>
    %53 = vector.broadcast %52 : vector<1x128xf32> to vector<8x128xf32>
    %54 = arith.select %45, %53, %51 : vector<8x128xi1>, vector<8x128xf32>
    %c0_27 = arith.constant 0 : index
    %c0_28 = arith.constant 0 : index
    %55 = vector.load %arg10[%c0_27, %c0_28] : memref<8x128xf32, #tpu.memory_space<vmem>>, vector<8x128xf32>
    tpu.vector_store %arg10[%c0_27, %c0_28], %54 {strides = array<i32>} : memref<8x128xf32, #tpu.memory_space<vmem>>, vector<8x128xf32>,
    return
  }
  func.func @transform_0(%arg0: i32) -> (i32, i32) {
    %c0_i32 = arith.constant 0 : i32
    %c0_i32_0 = arith.constant 0 : i32
    return %arg0, %c0_i32 : i32, i32
  }
  func.func @transform_1(%arg0: i32) -> (i32, i32) {
    %c0_i32 = arith.constant 0 : i32
    %c0_i32_0 = arith.constant 0 : i32
    %c0_i32_1 = arith.constant 0 : i32
    return %c0_i32, %c0_i32_0 : i32, i32
  }
  func.func @transform_2(%arg0: i32) -> (i32, i32) {
    %c0_i32 = arith.constant 0 : i32
    %c0_i32_0 = arith.constant 0 : i32
    %c0_i32_1 = arith.constant 0 : i32
    return %c0_i32, %c0_i32_0 : i32, i32
  }
  func.func @transform_3(%arg0: i32) -> (i32, i32) {
    %c0_i32 = arith.constant 0 : i32
    %c0_i32_0 = arith.constant 0 : i32
    %c0_i32_1 = arith.constant 0 : i32
    return %c0_i32, %c0_i32_0 : i32, i32
  }
  func.func @transform_4(%arg0: i32) -> (i32, i32) {
    %c0_i32 = arith.constant 0 : i32
    %c0_i32_0 = arith.constant 0 : i32
    return %arg0, %c0_i32 : i32, i32
  }
  func.func @transform_5(%arg0: i32) -> (i32, i32) {
    %c0_i32 = arith.constant 0 : i32
    %c0_i32_0 = arith.constant 0 : i32
    %c0_i32_1 = arith.constant 0 : i32
    return %c0_i32, %c0_i32_0 : i32, i32
  }
  func.func @transform_6(%arg0: i32) -> (i32, i32) {
    %c0_i32 = arith.constant 0 : i32
    %c0_i32_0 = arith.constant 0 : i32
    return %arg0, %c0_i32 : i32, i32
  }
  func.func @transform_7(%arg0: i32) -> (i32, i32) {
    %c0_i32 = arith.constant 0 : i32
    %c0_i32_0 = arith.constant 0 : i32
    return %arg0, %c0_i32 : i32, i32
  }
  func.func @transform_8(%arg0: i32) -> (i32, i32) {
    %c0_i32 = arith.constant 0 : i32
    %c0_i32_0 = arith.constant 0 : i32
    return %arg0, %c0_i32 : i32, i32
  }
  func.func @transform_9(%arg0: i32) -> (i32, i32) {
    %c0_i32 = arith.constant 0 : i32
    %c0_i32_0 = arith.constant 0 : i32
    return %arg0, %c0_i32 : i32, i32
  }
}

module attributes {stable_mosaic.version = 11 : i64} {
  func.func @_bn_apply_kernel(%arg0: i32, %arg1: memref<128x128xbf16, #tpu.memory_space<vmem>>, %arg2: memref<1x128xf32, #tpu.memory_space<vmem>>, %arg3: memref<1x128xf32, #tpu.memory_space<vmem>>, %arg4: memref<128x128xbf16, #tpu.memory_space<vmem>>, %arg5: memref<1x128xf32, #tpu.memory_space<vmem>>, %arg6: memref<1x128xf32, #tpu.memory_space<vmem>>, %arg7: memref<128x128xf32, #tpu.memory_space<vmem>>) attributes {dimension_semantics = [#tpu.dimension_semantics<parallel>], iteration_bounds = array<i64: 1>, scalar_prefetch = 0 : i64, scratch_operands = 0 : i64, tpu.core_type = #tpu.core_type<tc>, window_params = [{transform_indices = @transform_0, window_bounds = array<i64: 128, 128>}, {pipeline_mode = #tpu.pipeline_mode<synchronous>, transform_indices = @transform_1, window_bounds = array<i64: 1, 128>}, {pipeline_mode = #tpu.pipeline_mode<synchronous>, transform_indices = @transform_2, window_bounds = array<i64: 1, 128>}, {transform_indices = @transform_3, window_bounds = array<i64: 128, 128>}, {pipeline_mode = #tpu.pipeline_mode<synchronous>, transform_indices = @transform_4, window_bounds = array<i64: 1, 128>}, {pipeline_mode = #tpu.pipeline_mode<synchronous>, transform_indices = @transform_5, window_bounds = array<i64: 1, 128>}, {transform_indices = @transform_6, window_bounds = array<i64: 128, 128>}]} {
    %c0 = arith.constant 0 : index
    %c0_0 = arith.constant 0 : index
    %0 = vector.load %arg1[%c0, %c0_0] : memref<128x128xbf16, #tpu.memory_space<vmem>>, vector<128x128xbf16>
    %1 = arith.extf %0 : vector<128x128xbf16> to vector<128x128xf32>
    %c0_1 = arith.constant 0 : index
    %c0_2 = arith.constant 0 : index
    %2 = vector.load %arg2[%c0_1, %c0_2] : memref<1x128xf32, #tpu.memory_space<vmem>>, vector<1x128xf32>
    %3 = vector.broadcast %2 : vector<1x128xf32> to vector<128x128xf32>
    %4 = arith.mulf %1, %3 : vector<128x128xf32>
    %c0_3 = arith.constant 0 : index
    %c0_4 = arith.constant 0 : index
    %5 = vector.load %arg3[%c0_3, %c0_4] : memref<1x128xf32, #tpu.memory_space<vmem>>, vector<1x128xf32>
    %6 = vector.broadcast %5 : vector<1x128xf32> to vector<128x128xf32>
    %7 = arith.addf %4, %6 : vector<128x128xf32>
    %c0_5 = arith.constant 0 : index
    %c0_6 = arith.constant 0 : index
    %8 = vector.load %arg4[%c0_5, %c0_6] : memref<128x128xbf16, #tpu.memory_space<vmem>>, vector<128x128xbf16>
    %9 = arith.extf %8 : vector<128x128xbf16> to vector<128x128xf32>
    %c0_7 = arith.constant 0 : index
    %c0_8 = arith.constant 0 : index
    %10 = vector.load %arg5[%c0_7, %c0_8] : memref<1x128xf32, #tpu.memory_space<vmem>>, vector<1x128xf32>
    %11 = vector.broadcast %10 : vector<1x128xf32> to vector<128x128xf32>
    %12 = arith.mulf %9, %11 : vector<128x128xf32>
    %c0_9 = arith.constant 0 : index
    %c0_10 = arith.constant 0 : index
    %13 = vector.load %arg6[%c0_9, %c0_10] : memref<1x128xf32, #tpu.memory_space<vmem>>, vector<1x128xf32>
    %14 = vector.broadcast %13 : vector<1x128xf32> to vector<128x128xf32>
    %15 = arith.addf %12, %14 : vector<128x128xf32>
    %16 = arith.addf %7, %15 : vector<128x128xf32>
    %cst = arith.constant 0.000000e+00 : f32
    %17 = vector.broadcast %cst : f32 to vector<128x128xf32>
    %18 = arith.maximumf %16, %17 : vector<128x128xf32>
    %c0_11 = arith.constant 0 : index
    %c0_12 = arith.constant 0 : index
    %19 = vector.load %arg7[%c0_11, %c0_12] : memref<128x128xf32, #tpu.memory_space<vmem>>, vector<128x128xf32>
    tpu.vector_store %arg7[%c0_11, %c0_12], %18 {strides = array<i32>} : memref<128x128xf32, #tpu.memory_space<vmem>>, vector<128x128xf32>,
    return
  }
  func.func @transform_0(%arg0: i32) -> (i32, i32) {
    %c0_i32 = arith.constant 0 : i32
    %c0_i32_0 = arith.constant 0 : i32
    return %arg0, %c0_i32 : i32, i32
  }
  func.func @transform_1(%arg0: i32) -> (i32, i32) {
    %c0_i32 = arith.constant 0 : i32
    %c0_i32_0 = arith.constant 0 : i32
    %c0_i32_1 = arith.constant 0 : i32
    return %c0_i32, %c0_i32_0 : i32, i32
  }
  func.func @transform_2(%arg0: i32) -> (i32, i32) {
    %c0_i32 = arith.constant 0 : i32
    %c0_i32_0 = arith.constant 0 : i32
    %c0_i32_1 = arith.constant 0 : i32
    return %c0_i32, %c0_i32_0 : i32, i32
  }
  func.func @transform_3(%arg0: i32) -> (i32, i32) {
    %c0_i32 = arith.constant 0 : i32
    %c0_i32_0 = arith.constant 0 : i32
    return %arg0, %c0_i32 : i32, i32
  }
  func.func @transform_4(%arg0: i32) -> (i32, i32) {
    %c0_i32 = arith.constant 0 : i32
    %c0_i32_0 = arith.constant 0 : i32
    %c0_i32_1 = arith.constant 0 : i32
    return %c0_i32, %c0_i32_0 : i32, i32
  }
  func.func @transform_5(%arg0: i32) -> (i32, i32) {
    %c0_i32 = arith.constant 0 : i32
    %c0_i32_0 = arith.constant 0 : i32
    %c0_i32_1 = arith.constant 0 : i32
    return %c0_i32, %c0_i32_0 : i32, i32
  }
  func.func @transform_6(%arg0: i32) -> (i32, i32) {
    %c0_i32 = arith.constant 0 : i32
    %c0_i32_0 = arith.constant 0 : i32
    return %arg0, %c0_i32 : i32, i32
  }
}

</mosaic_0001>

<llo_original>
// kernel: tile.10
$region0: #{tile.10}
  #allocation0 [shape = 's32[1]{0}', space=sflag, size = 0x4, scoped, tag = 'scoped memory for tile.10']
  %s0 = inlined_call_operand.vmem [shape: f32[8], index: 0, kind: input, shape index: {}]
  %s1 = inlined_call_operand.vmem [shape: f32[9,8], index: 1, kind: output, shape index: {}]
  // Predicated region
  $region2: #{tile.10} parent=0 // pred_check
    _
  $region3: #{tile.10} parent=0 // pred_check_branch
    %3 = sbr.rel (0) target = $region5
  $region4: #{tile.10} parent=0 // pred_region
    _
  $region5: #{tile.10} parent=0 // pred_fallthru
    _
  %v4 = vld [vmem:[%s0] ss:$0 sm:$0xff]
  %5 = vst [vmem:[%s1] sm:$0xff] %v4
  %s6 = scalar_lea.vmem %s1, 8
  %7 = vst [vmem:[%s6] sm:$0xff] %v4

// kernel: tile.11
$region0: #{tile.11}
  %s0 = inlined_call_operand.vmem [shape: f32[9,8], index: 0, kind: input, shape index: {}]
  %s1 = inlined_call_operand.vmem [shape: f32[1,72], index: 1, kind: output, shape index: {}]
  $region1: #{tile.11} parent=0
    #allocation0 [shape = 'u8[4096]{0}', space=vmem, size = 0x1000, scoped, tag = 'scoped mem for output reshape']
    %v2 = vld [vmem:[%s0] sm:$0x1]
    %vm3 = vcmask 64512
    %4 = vst.msk [vmem:[#allocation0] sm:$0x1] %vm3, %v2
    %s5 = scalar_lea.vmem %s0, 8
    %v6 = vld [vmem:[%s5] sm:$0x1]
    %7 = vrot.lane.b32.xlu0 %v6, 64
    %v8 = vpop.permute.xlu0 %7
    %vm9 = vcmask 589312
    %10 = vst.msk [vmem:[#allocation0] sm:$0x1] %vm9, %v8
    %s11 = scalar_lea.vmem %s0, 7
    %v12 = vld [vmem:[%s11] sm:$0x1]
    %13 = vrot.lane.b32.xlu0 %v12, 56
    %v14 = vpop.permute.xlu0 %13
    %vm15 = vcmask 523712
    %16 = vst.msk [vmem:[#allocation0] sm:$0x1] %vm15, %v14
    %s17 = scalar_lea.vmem %s0, 6
    %v18 = vld [vmem:[%s17] sm:$0x1]
    %19 = vrot.lane.b32.xlu0 %v18, 48
    %v20 = vpop.permute.xlu0 %19
    %vm21 = vcmask 458112
    %22 = vst.msk [vmem:[#allocation0] sm:$0x1] %vm21, %v20
    %s23 = scalar_lea.vmem %s0, 5
    %v24 = vld [vmem:[%s23] sm:$0x1]
    %25 = vrot.lane.b32.xlu0 %v24, 40
    %v26 = vpop.permute.xlu0 %25
    %vm27 = vcmask 392512
    %28 = vst.msk [vmem:[#allocation0] sm:$0x1] %vm27, %v26
    %s29 = scalar_lea.vmem %s0, 4
    %v30 = vld [vmem:[%s29] sm:$0x1]
    %31 = vrot.lane.b32.xlu0 %v30, 32
    %v32 = vpop.permute.xlu0 %31
    %vm33 = vcmask 326912
    %34 = vst.msk [vmem:[#allocation0] sm:$0x1] %vm33, %v32
    %s35 = scalar_lea.vmem %s0, 3
    %v36 = vld [vmem:[%s35] sm:$0x1]
    %37 = vrot.lane.b32.xlu0 %v36, 24
    %v38 = vpop.permute.xlu0 %37
    %vm39 = vcmask 261312
    %40 = vst.msk [vmem:[#allocation0] sm:$0x1] %vm39, %v38
    %s41 = scalar_lea.vmem %s0, 2
    %v42 = vld [vmem:[%s41] sm:$0x1]
    %43 = vrot.lane.b32.xlu0 %v42, 16
    %v44 = vpop.permute.xlu0 %43
    %vm45 = vcmask 195712
    %46 = vst.msk [vmem:[#allocation0] sm:$0x1] %vm45, %v44
    %s47 = scalar_lea.vmem %s0, 1
    %v48 = vld [vmem:[%s47] sm:$0x1]
    %49 = vrot.lane.b32.xlu0 %v48, 8
    %v50 = vpop.permute.xlu0 %49
    %vm51 = vcmask 130112
    %52 = vst.msk [vmem:[#allocation0] sm:$0x1] %vm51, %v50
    %s54 = ssub.s32 2, 1
    %v55 = vld [vmem:[#allocation0] sm:%s54]
    %s57 = ssub.s32 2, 1
    %58 = vst [vmem:[%s1] sm:%s57] %v55

// kernel: basic_block_forward.3
$region0: #{basic_block_forward.3}
  #allocation0 [shape = 'u32[]', space=smem, size = 0x4, offset = 0x4, fixed_abs, tag = 'smem constant byte address 0x4 - core index']
  #allocation1 [shape = 'u32[72,128]{1,0:T(1,128)}', space=vmem, size = 0x9000, scoped, tag = 'internal scratch']
  %s0 = inlined_call_operand.vmem [shape: bf16[128,36], index: 0, kind: input, shape index: {}]
  %s1 = inlined_call_operand.vmem [shape: bf16[36,128], index: 1, kind: input, shape index: {}]
  %s2 = inlined_call_operand.vmem [shape: bf16[128,128], index: 2, kind: output, shape index: {0}]
  %s3 = inlined_call_operand.vmem [shape: f32[8,128], index: 3, kind: output, shape index: {1}]
  %4 = xla_tuple %s2, %s3
  %s5 = sld [smem:[#allocation0]]
  $region26: #{basic_block_forward.3} parent=0
    _
  %s7 = ssub.s32 1, %s5
  %s8 = scalar_select 0, %s7, %s5
  // Predicated region
  $region2: #{basic_block_forward.3} parent=0 // pred_check
    _
  $region3: #{basic_block_forward.3} parent=0 // pred_check_branch
    %10 = sbr.rel (0) target = $region5
  $region4: #{basic_block_forward.3} parent=0 // pred_region
    _
  $region5: #{basic_block_forward.3} parent=0 // pred_fallthru
    _
  // Predicated region
  $region6: #{basic_block_forward.3} parent=0 // pred_check
    _
  $region7: #{basic_block_forward.3} parent=0 // pred_check_branch
    %12 = sbr.rel (0) target = $region9
  $region8: #{basic_block_forward.3} parent=0 // pred_region
    _
  $region9: #{basic_block_forward.3} parent=0 // pred_fallthru
    _
  %v14 = vld [vmem:[%s0] sm:$0xf]
  %v15 = vld [vmem:[%s0 + $0x4] sm:$0xf]
  %v16 = vld [vmem:[%s0 + $0x8] sm:$0xf]
  %v17 = vld [vmem:[%s0 + $0xc] sm:$0xf]
  %v18 = vld [vmem:[%s0 + $0x10] sm:$0xf]
  %v19 = vld [vmem:[%s0 + $0x14] sm:$0xf]
  %v20 = vld [vmem:[%s0 + $0x18] sm:$0xf]
  %v21 = vld [vmem:[%s0 + $0x1c] sm:$0xf]
  %v22 = vld [vmem:[%s0 + $0x20] sm:$0xf]
  %v23 = vld [vmem:[%s0 + $0x24] sm:$0xf]
  %v24 = vld [vmem:[%s0 + $0x28] sm:$0xf]
  %v25 = vld [vmem:[%s0 + $0x2c] sm:$0xf]
  %v26 = vld [vmem:[%s0 + $0x30] sm:$0xf]
  %v27 = vld [vmem:[%s0 + $0x34] sm:$0xf]
  %v28 = vld [vmem:[%s0 + $0x38] sm:$0xf]
  %v29 = vld [vmem:[%s0 + $0x3c] sm:$0xf]
  %v30 = vld [vmem:[%s1] sm:$0xf]
  %v31 = vld [vmem:[%s1 + $0x4] sm:$0xf]
  %v32 = vld [vmem:[%s1 + $0x8] sm:$0xf]
  %v33 = vld [vmem:[%s1 + $0xc] sm:$0xf]
  %v34 = vld [vmem:[%s1 + $0x10] sm:$0x3]
  %v51 = vunpack.c.l.b16 %v14
  %v52 = vunpack.c.l.b16 %v15
  %v53 = vunpack.c.l.b16 %v16
  %v54 = vunpack.c.l.b16 %v17
  %v55 = vunpack.c.l.b16 %v18
  %v56 = vunpack.c.l.b16 %v19
  %v57 = vunpack.c.l.b16 %v20
  %v58 = vunpack.c.l.b16 %v21
  %v59 = vunpack.c.l.b16 %v22
  %v60 = vunpack.c.l.b16 %v23
  %v61 = vunpack.c.l.b16 %v24
  %v62 = vunpack.c.l.b16 %v25
  %v63 = vunpack.c.l.b16 %v26
  %v64 = vunpack.c.l.b16 %v27
  %v65 = vunpack.c.l.b16 %v28
  %v66 = vunpack.c.l.b16 %v29
  %v67 = vpack.c.b16 %v52, %v51
  %v68 = vpack.c.b16 %v54, %v53
  %v69 = vpack.c.b16 %v56, %v55
  %v70 = vpack.c.b16 %v58, %v57
  %v71 = vpack.c.b16 %v60, %v59
  %v72 = vpack.c.b16 %v62, %v61
  %v73 = vpack.c.b16 %v64, %v63
  %v74 = vpack.c.b16 %v66, %v65
  %v80 = vunpack.c.l.b16 %v30
  %v81 = vunpack.c.l.b16 %v31
  %v82 = vunpack.c.l.b16 %v32
  %v83 = vunpack.c.l.b16 %v33
  %v84 = vunpack.c.l.b16 %v34
  %v85 = vpack.c.b16 %v81, %v80
  %v86 = vpack.c.b16 %v83, %v82
  %v87 = vpack.c.b16 %v84, %v84
  %vm90 = vcmask 293888
  %v92 = vsel %vm90, %v67, 0
  %v95 = vsel %vm90, %v68, 0
  %v98 = vsel %vm90, %v69, 0
  %v101 = vsel %vm90, %v70, 0
  %v104 = vsel %vm90, %v71, 0
  %v107 = vsel %vm90, %v72, 0
  %v110 = vsel %vm90, %v73, 0
  %v113 = vsel %vm90, %v74, 0
  %vm115 = vcmask 1041408
  %v117 = vsel %vm115, %v87, 0
  %119 = vmatpush.bf16.msra.mxu0 0
  %120 = vmatpush.bf16.msra.mxu0 0
  %121 = vmatpush.bf16.msra.mxu0 0
  %122 = vmatpush.bf16.msra.mxu0 0
  %123 = vmatpush.bf16.msra.mxu0 0
  %124 = vmatpush.bf16.msra.mxu0 %v117
  %125 = vmatpush.bf16.msra.mxu0 %v86
  %126 = vmatpush.bf16.msra.mxu0 %v85
  %127 = vmatmul.bf16.gmra.mxu0 %v92
  %v128 = vpop.f32.mrf.mxu0
  %v129 = vadd.f32 0.0, %v128
  %v130 = vpop.f32.mrf.mxu0
  %v131 = vadd.f32 0.0, %v130
  %132 = vmatmul.bf16.gmra.mxu0 %v95
  %v133 = vpop.f32.mrf.mxu0
  %v134 = vadd.f32 0.0, %v133
  %v135 = vpop.f32.mrf.mxu0
  %v136 = vadd.f32 0.0, %v135
  %137 = vmatmul.bf16.gmra.mxu0 %v98
  %v138 = vpop.f32.mrf.mxu0
  %v139 = vadd.f32 0.0, %v138
  %v140 = vpop.f32.mrf.mxu0
  %v141 = vadd.f32 0.0, %v140
  %142 = vmatmul.bf16.gmra.mxu0 %v101
  %v143 = vpop.f32.mrf.mxu0
  %v144 = vadd.f32 0.0, %v143
  %v145 = vpop.f32.mrf.mxu0
  %v146 = vadd.f32 0.0, %v145
  %147 = vmatmul.bf16.gmra.mxu0 %v104
  %v148 = vpop.f32.mrf.mxu0
  %v149 = vadd.f32 0.0, %v148
  %v150 = vpop.f32.mrf.mxu0
  %v151 = vadd.f32 0.0, %v150
  %152 = vmatmul.bf16.gmra.mxu0 %v107
  %v153 = vpop.f32.mrf.mxu0
  %v154 = vadd.f32 0.0, %v153
  %v155 = vpop.f32.mrf.mxu0
  %v156 = vadd.f32 0.0, %v155
  %157 = vmatmul.bf16.gmra.mxu0 %v110
  %v158 = vpop.f32.mrf.mxu0
  %v159 = vadd.f32 0.0, %v158
  %v160 = vpop.f32.mrf.mxu0
  %v161 = vadd.f32 0.0, %v160
  %162 = vmatmul.bf16.gmra.mxu0 %v113
  %v163 = vpop.f32.mrf.mxu0
  %v164 = vadd.f32 0.0, %v163
  %v165 = vpop.f32.mrf.mxu0
  %v166 = vadd.f32 0.0, %v165
  %167 = vdwg.mxu0
  %v168 = vpack.c.bf16 %v129, %v129
  %v169 = vpack.c.bf16 %v131, %v131
  %v170 = vpack.c.bf16 %v134, %v134
  %v171 = vpack.c.bf16 %v136, %v136
  %v172 = vpack.c.bf16 %v139, %v139
  %v173 = vpack.c.bf16 %v141, %v141
  %v174 = vpack.c.bf16 %v144, %v144
  %v175 = vpack.c.bf16 %v146, %v146
  %v176 = vpack.c.bf16 %v149, %v149
  %v177 = vpack.c.bf16 %v151, %v151
  %v178 = vpack.c.bf16 %v154, %v154
  %v179 = vpack.c.bf16 %v156, %v156
  %v180 = vpack.c.bf16 %v159, %v159
  %v181 = vpack.c.bf16 %v161, %v161
  %v182 = vpack.c.bf16 %v164, %v164
  %v183 = vpack.c.bf16 %v166, %v166
  %184 = vst [vmem:[%s2] sm:$0xf] %v168
  %185 = vst [vmem:[%s2 + $0x4] sm:$0xf] %v169
  %186 = vst [vmem:[%s2 + $0x8] sm:$0xf] %v170
  %187 = vst [vmem:[%s2 + $0xc] sm:$0xf] %v171
  %188 = vst [vmem:[%s2 + $0x10] sm:$0xf] %v172
  %189 = vst [vmem:[%s2 + $0x14] sm:$0xf] %v173
  %190 = vst [vmem:[%s2 + $0x18] sm:$0xf] %v174
  %191 = vst [vmem:[%s2 + $0x1c] sm:$0xf] %v175
  %192 = vst [vmem:[%s2 + $0x20] sm:$0xf] %v176
  %193 = vst [vmem:[%s2 + $0x24] sm:$0xf] %v177
  %194 = vst [vmem:[%s2 + $0x28] sm:$0xf] %v178
  %195 = vst [vmem:[%s2 + $0x2c] sm:$0xf] %v179
  %196 = vst [vmem:[%s2 + $0x30] sm:$0xf] %v180
  %197 = vst [vmem:[%s2 + $0x34] sm:$0xf] %v181
  %198 = vst [vmem:[%s2 + $0x38] sm:$0xf] %v182
  %199 = vst [vmem:[%s2 + $0x3c] sm:$0xf] %v183
  %v200 = vadd.f32 %v129, %v131
  %v201 = vadd.f32 %v200, %v134
  %v202 = vadd.f32 %v201, %v136
  %v203 = vadd.f32 %v202, %v139
  %v204 = vadd.f32 %v203, %v141
  %v205 = vadd.f32 %v204, %v144
  %v206 = vadd.f32 %v205, %v146
  %v207 = vadd.f32 %v206, %v149
  %v208 = vadd.f32 %v207, %v151
  %v209 = vadd.f32 %v208, %v154
  %v210 = vadd.f32 %v209, %v156
  %v211 = vadd.f32 %v210, %v159
  %v212 = vadd.f32 %v211, %v161
  %v213 = vadd.f32 %v212, %v164
  %v214 = vadd.f32 %v213, %v166
  %v215 = vrot.slane %v214, 4
  %v216 = vadd.f32 %v214, %v215
  %v217 = vrot.slane %v216, 2
  %v218 = vadd.f32 %v216, %v217
  %v219 = vrot.slane %v218, 1
  %v220 = vadd.f32 %v218, %v219
  %v221 = vmul.f32 %v129, %v129
  %v222 = vmul.f32 %v131, %v131
  %v223 = vmul.f32 %v134, %v134
  %v224 = vmul.f32 %v136, %v136
  %v225 = vmul.f32 %v139, %v139
  %v226 = vmul.f32 %v141, %v141
  %v227 = vmul.f32 %v144, %v144
  %v228 = vmul.f32 %v146, %v146
  %v229 = vmul.f32 %v149, %v149
  %v230 = vmul.f32 %v151, %v151
  %v231 = vmul.f32 %v154, %v154
  %v232 = vmul.f32 %v156, %v156
  %v233 = vmul.f32 %v159, %v159
  %v234 = vmul.f32 %v161, %v161
  %v235 = vmul.f32 %v164, %v164
  %v236 = vmul.f32 %v166, %v166
  %v237 = vadd.f32 %v221, %v222
  %v238 = vadd.f32 %v237, %v223
  %v239 = vadd.f32 %v238, %v224
  %v240 = vadd.f32 %v239, %v225
  %v241 = vadd.f32 %v240, %v226
  %v242 = vadd.f32 %v241, %v227
  %v243 = vadd.f32 %v242, %v228
  %v244 = vadd.f32 %v243, %v229
  %v245 = vadd.f32 %v244, %v230
  %v246 = vadd.f32 %v245, %v231
  %v247 = vadd.f32 %v246, %v232
  %v248 = vadd.f32 %v247, %v233
  %v249 = vadd.f32 %v248, %v234
  %v250 = vadd.f32 %v249, %v235
  %v251 = vadd.f32 %v250, %v236
  %v252 = vrot.slane %v251, 4
  %v253 = vadd.f32 %v251, %v252
  %v254 = vrot.slane %v253, 2
  %v255 = vadd.f32 %v253, %v254
  %v256 = vrot.slane %v255, 1
  %v257 = vadd.f32 %v255, %v256
  %v258 = vlaneseq
  %v259 = vshrl.u32 %v258, 7
  %vm260 = vcmp.eq.s32.totalorder %v259, 0
  %vm261 = vcmp.eq.s32.totalorder %v259, 1
  %v262 = vsel %vm261, %v257, 0.0
  %v263 = vsel %vm260, %v220, %v262
  %264 = vst [vmem:[%s3] sm:$0xff] %v263
  // Predicated region
  $region10: #{basic_block_forward.3} parent=0 // pred_check
    _
  $region11: #{basic_block_forward.3} parent=0 // pred_check_branch
    %266 = sbr.rel (0) target = $region13
  $region12: #{basic_block_forward.3} parent=0 // pred_region
    _
  $region13: #{basic_block_forward.3} parent=0 // pred_fallthru
    _
  // Predicated region
  $region14: #{basic_block_forward.3} parent=0 // pred_check
    _
  $region15: #{basic_block_forward.3} parent=0 // pred_check_branch
    %268 = sbr.rel (0) target = $region17
  $region16: #{basic_block_forward.3} parent=0 // pred_region
    _
  $region17: #{basic_block_forward.3} parent=0 // pred_fallthru
    _
  // Predicated region
  $region18: #{basic_block_forward.3} parent=0 // pred_check
    _
  $region19: #{basic_block_forward.3} parent=0 // pred_check_branch
    %270 = sbr.rel (0) target = $region21
  $region20: #{basic_block_forward.3} parent=0 // pred_region
    _
  $region21: #{basic_block_forward.3} parent=0 // pred_fallthru
    _
  // Predicated region
  $region22: #{basic_block_forward.3} parent=0 // pred_check
    _
  $region23: #{basic_block_forward.3} parent=0 // pred_check_branch
    %272 = sbr.rel (0) target = $region25
  $region24: #{basic_block_forward.3} parent=0 // pred_region
    _
  $region25: #{basic_block_forward.3} parent=0 // pred_fallthru
    _

// kernel: basic_block_forward.4
$region0: #{basic_block_forward.4}
  #allocation0 [shape = 'u32[]', space=smem, size = 0x4, offset = 0x4, fixed_abs, tag = 'smem constant byte address 0x4 - core index']
  #allocation1 [shape = 'u32[72,128]{1,0:T(1,128)}', space=vmem, size = 0x9000, scoped, tag = 'internal scratch']
  %s0 = inlined_call_operand.vmem [shape: bf16[128,72], index: 0, kind: input, shape index: {}]
  %s1 = inlined_call_operand.vmem [shape: f32[1,72], index: 1, kind: input, shape index: {}]
  %s2 = inlined_call_operand.vmem [shape: f32[1,72], index: 2, kind: input, shape index: {}]
  %s3 = inlined_call_operand.vmem [shape: bf16[72,128], index: 3, kind: input, shape index: {}]
  %s4 = inlined_call_operand.vmem [shape: bf16[128,4], index: 4, kind: input, shape index: {}]
  %s5 = inlined_call_operand.vmem [shape: bf16[4,128], index: 5, kind: input, shape index: {}]
  %s6 = inlined_call_operand.vmem [shape: bf16[128,128], index: 6, kind: output, shape index: {0}]
  %s7 = inlined_call_operand.vmem [shape: f32[8,128], index: 7, kind: output, shape index: {1}]
  %s8 = inlined_call_operand.vmem [shape: bf16[128,128], index: 8, kind: output, shape index: {2}]
  %s9 = inlined_call_operand.vmem [shape: f32[8,128], index: 9, kind: output, shape index: {3}]
  %10 = xla_tuple %s6, %s7, %s8, %s9
  %s11 = sld [smem:[#allocation0]]
  $region58: #{basic_block_forward.4} parent=0
    _
  %s13 = ssub.s32 1, %s11
  %s14 = scalar_select 0, %s13, %s11
  // Predicated region
  $region2: #{basic_block_forward.4} parent=0 // pred_check
    _
  $region3: #{basic_block_forward.4} parent=0 // pred_check_branch
    %16 = sbr.rel (0) target = $region5
  $region4: #{basic_block_forward.4} parent=0 // pred_region
    _
  $region5: #{basic_block_forward.4} parent=0 // pred_fallthru
    _
  // Predicated region
  $region6: #{basic_block_forward.4} parent=0 // pred_check
    _
  $region7: #{basic_block_forward.4} parent=0 // pred_check_branch
    %18 = sbr.rel (0) target = $region9
  $region8: #{basic_block_forward.4} parent=0 // pred_region
    _
  $region9: #{basic_block_forward.4} parent=0 // pred_fallthru
    _
  // Predicated region
  $region10: #{basic_block_forward.4} parent=0 // pred_check
    _
  $region11: #{basic_block_forward.4} parent=0 // pred_check_branch
    %20 = sbr.rel (0) target = $region13
  $region12: #{basic_block_forward.4} parent=0 // pred_region
    _
  $region13: #{basic_block_forward.4} parent=0 // pred_fallthru
    _
  // Predicated region
  $region14: #{basic_block_forward.4} parent=0 // pred_check
    _
  $region15: #{basic_block_forward.4} parent=0 // pred_check_branch
    %22 = sbr.rel (0) target = $region17
  $region16: #{basic_block_forward.4} parent=0 // pred_region
    _
  $region17: #{basic_block_forward.4} parent=0 // pred_fallthru
    _
  // Predicated region
  $region18: #{basic_block_forward.4} parent=0 // pred_check
    _
  $region19: #{basic_block_forward.4} parent=0 // pred_check_branch
    %24 = sbr.rel (0) target = $region21
  $region20: #{basic_block_forward.4} parent=0 // pred_region
    _
  $region21: #{basic_block_forward.4} parent=0 // pred_fallthru
    _
  // Predicated region
  $region22: #{basic_block_forward.4} parent=0 // pred_check
    _
  $region23: #{basic_block_forward.4} parent=0 // pred_check_branch
    %26 = sbr.rel (0) target = $region25
  $region24: #{basic_block_forward.4} parent=0 // pred_region
    _
  $region25: #{basic_block_forward.4} parent=0 // pred_fallthru
    _
  %v28 = vld [vmem:[%s0] sm:$0xf]
  %v29 = vld [vmem:[%s0 + $0x4] sm:$0xf]
  %v30 = vld [vmem:[%s0 + $0x8] sm:$0xf]
  %v31 = vld [vmem:[%s0 + $0xc] sm:$0xf]
  %v32 = vld [vmem:[%s0 + $0x10] sm:$0xf]
  %v33 = vld [vmem:[%s0 + $0x14] sm:$0xf]
  %v34 = vld [vmem:[%s0 + $0x18] sm:$0xf]
  %v35 = vld [vmem:[%s0 + $0x1c] sm:$0xf]
  %v36 = vld [vmem:[%s0 + $0x20] sm:$0xf]
  %v37 = vld [vmem:[%s0 + $0x24] sm:$0xf]
  %v38 = vld [vmem:[%s0 + $0x28] sm:$0xf]
  %v39 = vld [vmem:[%s0 + $0x2c] sm:$0xf]
  %v40 = vld [vmem:[%s0 + $0x30] sm:$0xf]
  %v41 = vld [vmem:[%s0 + $0x34] sm:$0xf]
  %v42 = vld [vmem:[%s0 + $0x38] sm:$0xf]
  %v43 = vld [vmem:[%s0 + $0x3c] sm:$0xf]
  %v44 = vunpack.c.l.bf16 %v28
  %v45 = vunpack.c.l.bf16 %v29
  %v46 = vunpack.c.l.bf16 %v30
  %v47 = vunpack.c.l.bf16 %v31
  %v48 = vunpack.c.l.bf16 %v32
  %v49 = vunpack.c.l.bf16 %v33
  %v50 = vunpack.c.l.bf16 %v34
  %v51 = vunpack.c.l.bf16 %v35
  %v52 = vunpack.c.l.bf16 %v36
  %v53 = vunpack.c.l.bf16 %v37
  %v54 = vunpack.c.l.bf16 %v38
  %v55 = vunpack.c.l.bf16 %v39
  %v56 = vunpack.c.l.bf16 %v40
  %v57 = vunpack.c.l.bf16 %v41
  %v58 = vunpack.c.l.bf16 %v42
  %v59 = vunpack.c.l.bf16 %v43
  %v60 = vld [vmem:[%s1] sm:$0x1]
  %v62 = vperm.slane %v60, 0
  %v64 = vmul.f32 %v44, %v62
  %v65 = vmul.f32 %v45, %v62
  %v66 = vmul.f32 %v46, %v62
  %v67 = vmul.f32 %v47, %v62
  %v68 = vmul.f32 %v48, %v62
  %v69 = vmul.f32 %v49, %v62
  %v70 = vmul.f32 %v50, %v62
  %v71 = vmul.f32 %v51, %v62
  %v72 = vmul.f32 %v52, %v62
  %v73 = vmul.f32 %v53, %v62
  %v74 = vmul.f32 %v54, %v62
  %v75 = vmul.f32 %v55, %v62
  %v76 = vmul.f32 %v56, %v62
  %v77 = vmul.f32 %v57, %v62
  %v78 = vmul.f32 %v58, %v62
  %v79 = vmul.f32 %v59, %v62
  %v80 = vld [vmem:[%s2] sm:$0x1]
  %v82 = vperm.slane %v80, 0
  %v84 = vadd.f32 %v64, %v82
  %v85 = vadd.f32 %v65, %v82
  %v86 = vadd.f32 %v66, %v82
  %v87 = vadd.f32 %v67, %v82
  %v88 = vadd.f32 %v68, %v82
  %v89 = vadd.f32 %v69, %v82
  %v90 = vadd.f32 %v70, %v82
  %v91 = vadd.f32 %v71, %v82
  %v92 = vadd.f32 %v72, %v82
  %v93 = vadd.f32 %v73, %v82
  %v94 = vadd.f32 %v74, %v82
  %v95 = vadd.f32 %v75, %v82
  %v96 = vadd.f32 %v76, %v82
  %v97 = vadd.f32 %v77, %v82
  %v98 = vadd.f32 %v78, %v82
  %v99 = vadd.f32 %v79, %v82
  %v100 = vmax.f32 %v84, 0.0
  %v101 = vmax.f32 %v85, 0.0
  %v102 = vmax.f32 %v86, 0.0
  %v103 = vmax.f32 %v87, 0.0
  %v104 = vmax.f32 %v88, 0.0
  %v105 = vmax.f32 %v89, 0.0
  %v106 = vmax.f32 %v90, 0.0
  %v107 = vmax.f32 %v91, 0.0
  %v108 = vmax.f32 %v92, 0.0
  %v109 = vmax.f32 %v93, 0.0
  %v110 = vmax.f32 %v94, 0.0
  %v111 = vmax.f32 %v95, 0.0
  %v112 = vmax.f32 %v96, 0.0
  %v113 = vmax.f32 %v97, 0.0
  %v114 = vmax.f32 %v98, 0.0
  %v115 = vmax.f32 %v99, 0.0
  %v116 = vpack.c.bf16 %v101, %v100
  %v117 = vpack.c.bf16 %v103, %v102
  %v118 = vpack.c.bf16 %v105, %v104
  %v119 = vpack.c.bf16 %v107, %v106
  %v120 = vpack.c.bf16 %v109, %v108
  %v121 = vpack.c.bf16 %v111, %v110
  %v122 = vpack.c.bf16 %v113, %v112
  %v123 = vpack.c.bf16 %v115, %v114
  %v124 = vld [vmem:[%s3] sm:$0xf]
  %v125 = vld [vmem:[%s3 + $0x4] sm:$0xf]
  %v126 = vld [vmem:[%s3 + $0x8] sm:$0xf]
  %v127 = vld [vmem:[%s3 + $0xc] sm:$0xf]
  %v128 = vld [vmem:[%s3 + $0x10] sm:$0xf]
  %v129 = vld [vmem:[%s3 + $0x14] sm:$0xf]
  %v130 = vld [vmem:[%s3 + $0x18] sm:$0xf]
  %v131 = vld [vmem:[%s3 + $0x1c] sm:$0xf]
  %v132 = vld [vmem:[%s3 + $0x20] sm:$0xf]
  %v142 = vunpack.c.l.b16 %v124
  %v143 = vunpack.c.l.b16 %v125
  %v144 = vunpack.c.l.b16 %v126
  %v145 = vunpack.c.l.b16 %v127
  %v146 = vunpack.c.l.b16 %v128
  %v147 = vunpack.c.l.b16 %v129
  %v148 = vunpack.c.l.b16 %v130
  %v149 = vunpack.c.l.b16 %v131
  %v150 = vunpack.c.l.b16 %v132
  %v151 = vpack.c.b16 %v143, %v142
  %v152 = vpack.c.b16 %v145, %v144
  %v153 = vpack.c.b16 %v147, %v146
  %v154 = vpack.c.b16 %v149, %v148
  %v155 = vpack.c.b16 %v150, %v150
  %vm160 = vcmask 588800
  %v162 = vsel %vm160, %v116, 0
  %v165 = vsel %vm160, %v117, 0
  %v168 = vsel %vm160, %v118, 0
  %v171 = vsel %vm160, %v119, 0
  %v174 = vsel %vm160, %v120, 0
  %v177 = vsel %vm160, %v121, 0
  %v180 = vsel %vm160, %v122, 0
  %v183 = vsel %vm160, %v123, 0
  %vm185 = vcmask 1043456
  %v187 = vsel %vm185, %v155, 0
  %189 = vmatpush.bf16.msra.mxu0 0
  %190 = vmatpush.bf16.msra.mxu0 0
  %191 = vmatpush.bf16.msra.mxu0 0
  %192 = vmatpush.bf16.msra.mxu0 %v187
  %193 = vmatpush.bf16.msra.mxu0 %v154
  %194 = vmatpush.bf16.msra.mxu0 %v153
  %195 = vmatpush.bf16.msra.mxu0 %v152
  %196 = vmatpush.bf16.msra.mxu0 %v151
  %197 = vmatmul.bf16.gmra.mxu0 %v162
  %v198 = vpop.f32.mrf.mxu0
  %v199 = vadd.f32 0.0, %v198
  %v200 = vpop.f32.mrf.mxu0
  %v201 = vadd.f32 0.0, %v200
  %202 = vmatmul.bf16.gmra.mxu0 %v165
  %v203 = vpop.f32.mrf.mxu0
  %v204 = vadd.f32 0.0, %v203
  %v205 = vpop.f32.mrf.mxu0
  %v206 = vadd.f32 0.0, %v205
  %207 = vmatmul.bf16.gmra.mxu0 %v168
  %v208 = vpop.f32.mrf.mxu0
  %v209 = vadd.f32 0.0, %v208
  %v210 = vpop.f32.mrf.mxu0
  %v211 = vadd.f32 0.0, %v210
  %212 = vmatmul.bf16.gmra.mxu0 %v171
  %v213 = vpop.f32.mrf.mxu0
  %v214 = vadd.f32 0.0, %v213
  %v215 = vpop.f32.mrf.mxu0
  %v216 = vadd.f32 0.0, %v215
  %217 = vmatmul.bf16.gmra.mxu0 %v174
  %v218 = vpop.f32.mrf.mxu0
  %v219 = vadd.f32 0.0, %v218
  %v220 = vpop.f32.mrf.mxu0
  %v221 = vadd.f32 0.0, %v220
  %222 = vmatmul.bf16.gmra.mxu0 %v177
  %v223 = vpop.f32.mrf.mxu0
  %v224 = vadd.f32 0.0, %v223
  %v225 = vpop.f32.mrf.mxu0
  %v226 = vadd.f32 0.0, %v225
  %227 = vmatmul.bf16.gmra.mxu0 %v180
  %v228 = vpop.f32.mrf.mxu0
  %v229 = vadd.f32 0.0, %v228
  %v230 = vpop.f32.mrf.mxu0
  %v231 = vadd.f32 0.0, %v230
  %232 = vmatmul.bf16.gmra.mxu0 %v183
  %v233 = vpop.f32.mrf.mxu0
  %v234 = vadd.f32 0.0, %v233
  %v235 = vpop.f32.mrf.mxu0
  %v236 = vadd.f32 0.0, %v235
  %237 = vdwg.mxu0
  %v238 = vpack.c.bf16 %v199, %v199
  %v239 = vpack.c.bf16 %v201, %v201
  %v240 = vpack.c.bf16 %v204, %v204
  %v241 = vpack.c.bf16 %v206, %v206
  %v242 = vpack.c.bf16 %v209, %v209
  %v243 = vpack.c.bf16 %v211, %v211
  %v244 = vpack.c.bf16 %v214, %v214
  %v245 = vpack.c.bf16 %v216, %v216
  %v246 = vpack.c.bf16 %v219, %v219
  %v247 = vpack.c.bf16 %v221, %v221
  %v248 = vpack.c.bf16 %v224, %v224
  %v249 = vpack.c.bf16 %v226, %v226
  %v250 = vpack.c.bf16 %v229, %v229
  %v251 = vpack.c.bf16 %v231, %v231
  %v252 = vpack.c.bf16 %v234, %v234
  %v253 = vpack.c.bf16 %v236, %v236
  %254 = vst [vmem:[%s6] sm:$0xf] %v238
  %255 = vst [vmem:[%s6 + $0x4] sm:$0xf] %v239
  %256 = vst [vmem:[%s6 + $0x8] sm:$0xf] %v240
  %257 = vst [vmem:[%s6 + $0xc] sm:$0xf] %v241
  %258 = vst [vmem:[%s6 + $0x10] sm:$0xf] %v242
  %259 = vst [vmem:[%s6 + $0x14] sm:$0xf] %v243
  %260 = vst [vmem:[%s6 + $0x18] sm:$0xf] %v244
  %261 = vst [vmem:[%s6 + $0x1c] sm:$0xf] %v245
  %262 = vst [vmem:[%s6 + $0x20] sm:$0xf] %v246
  %263 = vst [vmem:[%s6 + $0x24] sm:$0xf] %v247
  %264 = vst [vmem:[%s6 + $0x28] sm:$0xf] %v248
  %265 = vst [vmem:[%s6 + $0x2c] sm:$0xf] %v249
  %266 = vst [vmem:[%s6 + $0x30] sm:$0xf] %v250
  %267 = vst [vmem:[%s6 + $0x34] sm:$0xf] %v251
  %268 = vst [vmem:[%s6 + $0x38] sm:$0xf] %v252
  %269 = vst [vmem:[%s6 + $0x3c] sm:$0xf] %v253
  %v270 = vadd.f32 %v199, %v201
  %v271 = vadd.f32 %v270, %v204
  %v272 = vadd.f32 %v271, %v206
  %v273 = vadd.f32 %v272, %v209
  %v274 = vadd.f32 %v273, %v211
  %v275 = vadd.f32 %v274, %v214
  %v276 = vadd.f32 %v275, %v216
  %v277 = vadd.f32 %v276, %v219
  %v278 = vadd.f32 %v277, %v221
  %v279 = vadd.f32 %v278, %v224
  %v280 = vadd.f32 %v279, %v226
  %v281 = vadd.f32 %v280, %v229
  %v282 = vadd.f32 %v281, %v231
  %v283 = vadd.f32 %v282, %v234
  %v284 = vadd.f32 %v283, %v236
  %v285 = vrot.slane %v284, 4
  %v286 = vadd.f32 %v284, %v285
  %v287 = vrot.slane %v286, 2
  %v288 = vadd.f32 %v286, %v287
  %v289 = vrot.slane %v288, 1
  %v290 = vadd.f32 %v288, %v289
  %v291 = vmul.f32 %v199, %v199
  %v292 = vmul.f32 %v201, %v201
  %v293 = vmul.f32 %v204, %v204
  %v294 = vmul.f32 %v206, %v206
  %v295 = vmul.f32 %v209, %v209
  %v296 = vmul.f32 %v211, %v211
  %v297 = vmul.f32 %v214, %v214
  %v298 = vmul.f32 %v216, %v216
  %v299 = vmul.f32 %v219, %v219
  %v300 = vmul.f32 %v221, %v221
  %v301 = vmul.f32 %v224, %v224
  %v302 = vmul.f32 %v226, %v226
  %v303 = vmul.f32 %v229, %v229
  %v304 = vmul.f32 %v231, %v231
  %v305 = vmul.f32 %v234, %v234
  %v306 = vmul.f32 %v236, %v236
  %v307 = vadd.f32 %v291, %v292
  %v308 = vadd.f32 %v307, %v293
  %v309 = vadd.f32 %v308, %v294
  %v310 = vadd.f32 %v309, %v295
  %v311 = vadd.f32 %v310, %v296
  %v312 = vadd.f32 %v311, %v297
  %v313 = vadd.f32 %v312, %v298
  %v314 = vadd.f32 %v313, %v299
  %v315 = vadd.f32 %v314, %v300
  %v316 = vadd.f32 %v315, %v301
  %v317 = vadd.f32 %v316, %v302
  %v318 = vadd.f32 %v317, %v303
  %v319 = vadd.f32 %v318, %v304
  %v320 = vadd.f32 %v319, %v305
  %v321 = vadd.f32 %v320, %v306
  %v322 = vrot.slane %v321, 4
  %v323 = vadd.f32 %v321, %v322
  %v324 = vrot.slane %v323, 2
  %v325 = vadd.f32 %v323, %v324
  %v326 = vrot.slane %v325, 1
  %v327 = vadd.f32 %v325, %v326
  %v328 = vlaneseq
  %v329 = vshrl.u32 %v328, 7
  %vm330 = vcmp.eq.s32.totalorder %v329, 0
  %vm331 = vcmp.eq.s32.totalorder %v329, 1
  %v332 = vsel %vm331, %v327, 0.0
  %v333 = vsel %vm330, %v290, %v332
  %334 = vst [vmem:[%s7] sm:$0xff] %v333
  %v335 = vld [vmem:[%s4] sm:$0xf]
  %v336 = vld [vmem:[%s4 + $0x4] sm:$0xf]
  %v337 = vld [vmem:[%s4 + $0x8] sm:$0xf]
  %v338 = vld [vmem:[%s4 + $0xc] sm:$0xf]
  %v339 = vld [vmem:[%s4 + $0x10] sm:$0xf]
  %v340 = vld [vmem:[%s4 + $0x14] sm:$0xf]
  %v341 = vld [vmem:[%s4 + $0x18] sm:$0xf]
  %v342 = vld [vmem:[%s4 + $0x1c] sm:$0xf]
  %v343 = vld [vmem:[%s4 + $0x20] sm:$0xf]
  %v344 = vld [vmem:[%s4 + $0x24] sm:$0xf]
  %v345 = vld [vmem:[%s4 + $0x28] sm:$0xf]
  %v346 = vld [vmem:[%s4 + $0x2c] sm:$0xf]
  %v347 = vld [vmem:[%s4 + $0x30] sm:$0xf]
  %v348 = vld [vmem:[%s4 + $0x34] sm:$0xf]
  %v349 = vld [vmem:[%s4 + $0x38] sm:$0xf]
  %v350 = vld [vmem:[%s4 + $0x3c] sm:$0xf]
  %v351 = vld [vmem:[%s5] sm:$0x3]
  %v368 = vunpack.c.l.b16 %v335
  %v369 = vunpack.c.l.b16 %v336
  %v370 = vunpack.c.l.b16 %v337
  %v371 = vunpack.c.l.b16 %v338
  %v372 = vunpack.c.l.b16 %v339
  %v373 = vunpack.c.l.b16 %v340
  %v374 = vunpack.c.l.b16 %v341
  %v375 = vunpack.c.l.b16 %v342
  %v376 = vunpack.c.l.b16 %v343
  %v377 = vunpack.c.l.b16 %v344
  %v378 = vunpack.c.l.b16 %v345
  %v379 = vunpack.c.l.b16 %v346
  %v380 = vunpack.c.l.b16 %v347
  %v381 = vunpack.c.l.b16 %v348
  %v382 = vunpack.c.l.b16 %v349
  %v383 = vunpack.c.l.b16 %v350
  %v384 = vpack.c.b16 %v369, %v368
  %v385 = vpack.c.b16 %v371, %v370
  %v386 = vpack.c.b16 %v373, %v372
  %v387 = vpack.c.b16 %v375, %v374
  %v388 = vpack.c.b16 %v377, %v376
  %v389 = vpack.c.b16 %v379, %v378
  %v390 = vpack.c.b16 %v381, %v380
  %v391 = vpack.c.b16 %v383, %v382
  %vm392 = vcmask 31744
  %v394 = vsel %vm392, %v384, 0
  %v397 = vsel %vm392, %v385, 0
  %v400 = vsel %vm392, %v386, 0
  %v403 = vsel %vm392, %v387, 0
  %v406 = vsel %vm392, %v388, 0
  %v409 = vsel %vm392, %v389, 0
  %v412 = vsel %vm392, %v390, 0
  %v415 = vsel %vm392, %v391, 0
  %vm417 = vcmask 1041408
  %v419 = vsel %vm417, %v351, 0
  %421 = vmatpush.bf16.msra.mxu0 0
  %422 = vmatpush.bf16.msra.mxu0 0
  %423 = vmatpush.bf16.msra.mxu0 0
  %424 = vmatpush.bf16.msra.mxu0 0
  %425 = vmatpush.bf16.msra.mxu0 0
  %426 = vmatpush.bf16.msra.mxu0 0
  %427 = vmatpush.bf16.msra.mxu0 0
  %428 = vmatpush.bf16.msra.mxu0 %v419
  %429 = vmatmul.bf16.gmra.mxu0 %v394
  %v430 = vpop.f32.mrf.mxu0
  %v431 = vadd.f32 0.0, %v430
  %v432 = vpop.f32.mrf.mxu0
  %v433 = vadd.f32 0.0, %v432
  %434 = vmatmul.bf16.gmra.mxu0 %v397
  %v435 = vpop.f32.mrf.mxu0
  %v436 = vadd.f32 0.0, %v435
  %v437 = vpop.f32.mrf.mxu0
  %v438 = vadd.f32 0.0, %v437
  %439 = vmatmul.bf16.gmra.mxu0 %v400
  %v440 = vpop.f32.mrf.mxu0
  %v441 = vadd.f32 0.0, %v440
  %v442 = vpop.f32.mrf.mxu0
  %v443 = vadd.f32 0.0, %v442
  %444 = vmatmul.bf16.gmra.mxu0 %v403
  %v445 = vpop.f32.mrf.mxu0
  %v446 = vadd.f32 0.0, %v445
  %v447 = vpop.f32.mrf.mxu0
  %v448 = vadd.f32 0.0, %v447
  %449 = vmatmul.bf16.gmra.mxu0 %v406
  %v450 = vpop.f32.mrf.mxu0
  %v451 = vadd.f32 0.0, %v450
  %v452 = vpop.f32.mrf.mxu0
  %v453 = vadd.f32 0.0, %v452
  %454 = vmatmul.bf16.gmra.mxu0 %v409
  %v455 = vpop.f32.mrf.mxu0
  %v456 = vadd.f32 0.0, %v455
  %v457 = vpop.f32.mrf.mxu0
  %v458 = vadd.f32 0.0, %v457
  %459 = vmatmul.bf16.gmra.mxu0 %v412
  %v460 = vpop.f32.mrf.mxu0
  %v461 = vadd.f32 0.0, %v460
  %v462 = vpop.f32.mrf.mxu0
  %v463 = vadd.f32 0.0, %v462
  %464 = vmatmul.bf16.gmra.mxu0 %v415
  %v465 = vpop.f32.mrf.mxu0
  %v466 = vadd.f32 0.0, %v465
  %v467 = vpop.f32.mrf.mxu0
  %v468 = vadd.f32 0.0, %v467
  %469 = vdwg.mxu0
  %v470 = vpack.c.bf16 %v431, %v431
  %v471 = vpack.c.bf16 %v433, %v433
  %v472 = vpack.c.bf16 %v436, %v436
  %v473 = vpack.c.bf16 %v438, %v438
  %v474 = vpack.c.bf16 %v441, %v441
  %v475 = vpack.c.bf16 %v443, %v443
  %v476 = vpack.c.bf16 %v446, %v446
  %v477 = vpack.c.bf16 %v448, %v448
  %v478 = vpack.c.bf16 %v451, %v451
  %v479 = vpack.c.bf16 %v453, %v453
  %v480 = vpack.c.bf16 %v456, %v456
  %v481 = vpack.c.bf16 %v458, %v458
  %v482 = vpack.c.bf16 %v461, %v461
  %v483 = vpack.c.bf16 %v463, %v463
  %v484 = vpack.c.bf16 %v466, %v466
  %v485 = vpack.c.bf16 %v468, %v468
  %486 = vst [vmem:[%s8] sm:$0xf] %v470
  %487 = vst [vmem:[%s8 + $0x4] sm:$0xf] %v471
  %488 = vst [vmem:[%s8 + $0x8] sm:$0xf] %v472
  %489 = vst [vmem:[%s8 + $0xc] sm:$0xf] %v473
  %490 = vst [vmem:[%s8 + $0x10] sm:$0xf] %v474
  %491 = vst [vmem:[%s8 + $0x14] sm:$0xf] %v475
  %492 = vst [vmem:[%s8 + $0x18] sm:$0xf] %v476
  %493 = vst [vmem:[%s8 + $0x1c] sm:$0xf] %v477
  %494 = vst [vmem:[%s8 + $0x20] sm:$0xf] %v478
  %495 = vst [vmem:[%s8 + $0x24] sm:$0xf] %v479
  %496 = vst [vmem:[%s8 + $0x28] sm:$0xf] %v480
  %497 = vst [vmem:[%s8 + $0x2c] sm:$0xf] %v481
  %498 = vst [vmem:[%s8 + $0x30] sm:$0xf] %v482
  %499 = vst [vmem:[%s8 + $0x34] sm:$0xf] %v483
  %500 = vst [vmem:[%s8 + $0x38] sm:$0xf] %v484
  %501 = vst [vmem:[%s8 + $0x3c] sm:$0xf] %v485
  %v502 = vadd.f32 %v431, %v433
  %v503 = vadd.f32 %v502, %v436
  %v504 = vadd.f32 %v503, %v438
  %v505 = vadd.f32 %v504, %v441
  %v506 = vadd.f32 %v505, %v443
  %v507 = vadd.f32 %v506, %v446
  %v508 = vadd.f32 %v507, %v448
  %v509 = vadd.f32 %v508, %v451
  %v510 = vadd.f32 %v509, %v453
  %v511 = vadd.f32 %v510, %v456
  %v512 = vadd.f32 %v511, %v458
  %v513 = vadd.f32 %v512, %v461
  %v514 = vadd.f32 %v513, %v463
  %v515 = vadd.f32 %v514, %v466
  %v516 = vadd.f32 %v515, %v468
  %v517 = vrot.slane %v516, 4
  %v518 = vadd.f32 %v516, %v517
  %v519 = vrot.slane %v518, 2
  %v520 = vadd.f32 %v518, %v519
  %v521 = vrot.slane %v520, 1
  %v522 = vadd.f32 %v520, %v521
  %v523 = vmul.f32 %v431, %v431
  %v524 = vmul.f32 %v433, %v433
  %v525 = vmul.f32 %v436, %v436
  %v526 = vmul.f32 %v438, %v438
  %v527 = vmul.f32 %v441, %v441
  %v528 = vmul.f32 %v443, %v443
  %v529 = vmul.f32 %v446, %v446
  %v530 = vmul.f32 %v448, %v448
  %v531 = vmul.f32 %v451, %v451
  %v532 = vmul.f32 %v453, %v453
  %v533 = vmul.f32 %v456, %v456
  %v534 = vmul.f32 %v458, %v458
  %v535 = vmul.f32 %v461, %v461
  %v536 = vmul.f32 %v463, %v463
  %v537 = vmul.f32 %v466, %v466
  %v538 = vmul.f32 %v468, %v468
  %v539 = vadd.f32 %v523, %v524
  %v540 = vadd.f32 %v539, %v525
  %v541 = vadd.f32 %v540, %v526
  %v542 = vadd.f32 %v541, %v527
  %v543 = vadd.f32 %v542, %v528
  %v544 = vadd.f32 %v543, %v529
  %v545 = vadd.f32 %v544, %v530
  %v546 = vadd.f32 %v545, %v531
  %v547 = vadd.f32 %v546, %v532
  %v548 = vadd.f32 %v547, %v533
  %v549 = vadd.f32 %v548, %v534
  %v550 = vadd.f32 %v549, %v535
  %v551 = vadd.f32 %v550, %v536
  %v552 = vadd.f32 %v551, %v537
  %v553 = vadd.f32 %v552, %v538
  %v554 = vrot.slane %v553, 4
  %v555 = vadd.f32 %v553, %v554
  %v556 = vrot.slane %v555, 2
  %v557 = vadd.f32 %v555, %v556
  %v558 = vrot.slane %v557, 1
  %v559 = vadd.f32 %v557, %v558
  %v560 = vsel %vm331, %v559, 0.0
  %v561 = vsel %vm330, %v522, %v560
  %562 = vst [vmem:[%s9] sm:$0xff] %v561
  // Predicated region
  $region26: #{basic_block_forward.4} parent=0 // pred_check
    _
  $region27: #{basic_block_forward.4} parent=0 // pred_check_branch
    %564 = sbr.rel (0) target = $region29
  $region28: #{basic_block_forward.4} parent=0 // pred_region
    _
  $region29: #{basic_block_forward.4} parent=0 // pred_fallthru
    _
  // Predicated region
  $region30: #{basic_block_forward.4} parent=0 // pred_check
    _
  $region31: #{basic_block_forward.4} parent=0 // pred_check_branch
    %566 = sbr.rel (0) target = $region33
  $region32: #{basic_block_forward.4} parent=0 // pred_region
    _
  $region33: #{basic_block_forward.4} parent=0 // pred_fallthru
    _
  // Predicated region
  $region34: #{basic_block_forward.4} parent=0 // pred_check
    _
  $region35: #{basic_block_forward.4} parent=0 // pred_check_branch
    %568 = sbr.rel (0) target = $region37
  $region36: #{basic_block_forward.4} parent=0 // pred_region
    _
  $region37: #{basic_block_forward.4} parent=0 // pred_fallthru
    _
  // Predicated region
  $region38: #{basic_block_forward.4} parent=0 // pred_check
    _
  $region39: #{basic_block_forward.4} parent=0 // pred_check_branch
    %570 = sbr.rel (0) target = $region41
  $region40: #{basic_block_forward.4} parent=0 // pred_region
    _
  $region41: #{basic_block_forward.4} parent=0 // pred_fallthru
    _
  // Predicated region
  $region42: #{basic_block_forward.4} parent=0 // pred_check
    _
  $region43: #{basic_block_forward.4} parent=0 // pred_check_branch
    %572 = sbr.rel (0) target = $region45
  $region44: #{basic_block_forward.4} parent=0 // pred_region
    _
  $region45: #{basic_block_forward.4} parent=0 // pred_fallthru
    _
  // Predicated region
  $region46: #{basic_block_forward.4} parent=0 // pred_check
    _
  $region47: #{basic_block_forward.4} parent=0 // pred_check_branch
    %574 = sbr.rel (0) target = $region49
  $region48: #{basic_block_forward.4} parent=0 // pred_region
    _
  $region49: #{basic_block_forward.4} parent=0 // pred_fallthru
    _
  // Predicated region
  $region50: #{basic_block_forward.4} parent=0 // pred_check
    _
  $region51: #{basic_block_forward.4} parent=0 // pred_check_branch
    %576 = sbr.rel (0) target = $region53
  $region52: #{basic_block_forward.4} parent=0 // pred_region
    _
  $region53: #{basic_block_forward.4} parent=0 // pred_fallthru
    _
  // Predicated region
  $region54: #{basic_block_forward.4} parent=0 // pred_check
    _
  $region55: #{basic_block_forward.4} parent=0 // pred_check_branch
    %578 = sbr.rel (0) target = $region57
  $region56: #{basic_block_forward.4} parent=0 // pred_region
    _
  $region57: #{basic_block_forward.4} parent=0 // pred_fallthru
    _

// kernel: basic_block_forward.5
$region0: #{basic_block_forward.5}
  #allocation0 [shape = 'u32[]', space=smem, size = 0x4, offset = 0x4, fixed_abs, tag = 'smem constant byte address 0x4 - core index']
  #allocation1 [shape = 'u32[72,128]{1,0:T(1,128)}', space=vmem, size = 0x9000, scoped, tag = 'internal scratch']
  %s0 = inlined_call_operand.vmem [shape: bf16[128,128], index: 0, kind: input, shape index: {}]
  %s1 = inlined_call_operand.vmem [shape: f32[1,128], index: 1, kind: input, shape index: {}]
  %s2 = inlined_call_operand.vmem [shape: f32[1,128], index: 2, kind: input, shape index: {}]
  %s3 = inlined_call_operand.vmem [shape: bf16[128,128], index: 3, kind: input, shape index: {}]
  %s4 = inlined_call_operand.vmem [shape: f32[1,128], index: 4, kind: input, shape index: {}]
  %s5 = inlined_call_operand.vmem [shape: f32[1,128], index: 5, kind: input, shape index: {}]
  %s6 = inlined_call_operand.hbm [shape: f32[128,128], index: 6, kind: output, shape index: {}]
  %s7 = sld [smem:[#allocation0]]
  $region34: #{basic_block_forward.5} parent=0
    _
  %s9 = ssub.s32 1, %s7
  %s10 = scalar_select 0, %s9, %s7
  $region1: #{basic_block_forward.5} parent=0
    #allocation2 [shape = 'u8[65536]{0}', space=vmem, size = 0x10000, scoped, tag = 'output window, operand 0, single buffered']
    #allocation3 [shape = 's32[1]{0}', space=sflag, size = 0x4, scoped, tag = 'scoped memory for basic_block_forward.5']
    %11 = vsyncpa [#allocation3], 0
    // Predicated region
    $region2: #{basic_block_forward.5} parent=1 // pred_check
      _
    $region3: #{basic_block_forward.5} parent=1 // pred_check_branch
      %13 = sbr.rel (0) target = $region5
    $region4: #{basic_block_forward.5} parent=1 // pred_region
      _
    $region5: #{basic_block_forward.5} parent=1 // pred_fallthru
      _
    // Predicated region
    $region6: #{basic_block_forward.5} parent=1 // pred_check
      _
    $region7: #{basic_block_forward.5} parent=1 // pred_check_branch
      %15 = sbr.rel (0) target = $region9
    $region8: #{basic_block_forward.5} parent=1 // pred_region
      _
    $region9: #{basic_block_forward.5} parent=1 // pred_fallthru
      _
    // Predicated region
    $region10: #{basic_block_forward.5} parent=1 // pred_check
      _
    $region11: #{basic_block_forward.5} parent=1 // pred_check_branch
      %17 = sbr.rel (0) target = $region13
    $region12: #{basic_block_forward.5} parent=1 // pred_region
      _
    $region13: #{basic_block_forward.5} parent=1 // pred_fallthru
      _
    // Predicated region
    $region14: #{basic_block_forward.5} parent=1 // pred_check
      _
    $region15: #{basic_block_forward.5} parent=1 // pred_check_branch
      %19 = sbr.rel (0) target = $region17
    $region16: #{basic_block_forward.5} parent=1 // pred_region
      _
    $region17: #{basic_block_forward.5} parent=1 // pred_fallthru
      _
    // Predicated region
    $region18: #{basic_block_forward.5} parent=1 // pred_check
      _
    $region19: #{basic_block_forward.5} parent=1 // pred_check_branch
      %21 = sbr.rel (0) target = $region21
    $region20: #{basic_block_forward.5} parent=1 // pred_region
      _
    $region21: #{basic_block_forward.5} parent=1 // pred_fallthru
      _
    // Predicated region
    $region22: #{basic_block_forward.5} parent=1 // pred_check
      _
    $region23: #{basic_block_forward.5} parent=1 // pred_check_branch
      %23 = sbr.rel (0) target = $region25
    $region24: #{basic_block_forward.5} parent=1 // pred_region
      _
    $region25: #{basic_block_forward.5} parent=1 // pred_fallthru
      _
    %v24 = vld [vmem:[%s0] sm:$0xf]
    %v25 = vld [vmem:[%s0 + $0x4] sm:$0xf]
    %v26 = vld [vmem:[%s0 + $0x8] sm:$0xf]
    %v27 = vld [vmem:[%s0 + $0xc] sm:$0xf]
    %v28 = vld [vmem:[%s0 + $0x10] sm:$0xf]
    %v29 = vld [vmem:[%s0 + $0x14] sm:$0xf]
    %v30 = vld [vmem:[%s0 + $0x18] sm:$0xf]
    %v31 = vld [vmem:[%s0 + $0x1c] sm:$0xf]
    %v32 = vld [vmem:[%s0 + $0x20] sm:$0xf]
    %v33 = vld [vmem:[%s0 + $0x24] sm:$0xf]
    %v34 = vld [vmem:[%s0 + $0x28] sm:$0xf]
    %v35 = vld [vmem:[%s0 + $0x2c] sm:$0xf]
    %v36 = vld [vmem:[%s0 + $0x30] sm:$0xf]
    %v37 = vld [vmem:[%s0 + $0x34] sm:$0xf]
    %v38 = vld [vmem:[%s0 + $0x38] sm:$0xf]
    %v39 = vld [vmem:[%s0 + $0x3c] sm:$0xf]
    %v40 = vunpack.c.l.bf16 %v24
    %v41 = vunpack.c.l.bf16 %v25
    %v42 = vunpack.c.l.bf16 %v26
    %v43 = vunpack.c.l.bf16 %v27
    %v44 = vunpack.c.l.bf16 %v28
    %v45 = vunpack.c.l.bf16 %v29
    %v46 = vunpack.c.l.bf16 %v30
    %v47 = vunpack.c.l.bf16 %v31
    %v48 = vunpack.c.l.bf16 %v32
    %v49 = vunpack.c.l.bf16 %v33
    %v50 = vunpack.c.l.bf16 %v34
    %v51 = vunpack.c.l.bf16 %v35
    %v52 = vunpack.c.l.bf16 %v36
    %v53 = vunpack.c.l.bf16 %v37
    %v54 = vunpack.c.l.bf16 %v38
    %v55 = vunpack.c.l.bf16 %v39
    %v56 = vld [vmem:[%s1] sm:$0x1]
    %v58 = vperm.slane %v56, 0
    %v60 = vmul.f32 %v40, %v58
    %v61 = vmul.f32 %v41, %v58
    %v62 = vmul.f32 %v42, %v58
    %v63 = vmul.f32 %v43, %v58
    %v64 = vmul.f32 %v44, %v58
    %v65 = vmul.f32 %v45, %v58
    %v66 = vmul.f32 %v46, %v58
    %v67 = vmul.f32 %v47, %v58
    %v68 = vmul.f32 %v48, %v58
    %v69 = vmul.f32 %v49, %v58
    %v70 = vmul.f32 %v50, %v58
    %v71 = vmul.f32 %v51, %v58
    %v72 = vmul.f32 %v52, %v58
    %v73 = vmul.f32 %v53, %v58
    %v74 = vmul.f32 %v54, %v58
    %v75 = vmul.f32 %v55, %v58
    %v76 = vld [vmem:[%s2] sm:$0x1]
    %v78 = vperm.slane %v76, 0
    %v80 = vadd.f32 %v60, %v78
    %v81 = vadd.f32 %v61, %v78
    %v82 = vadd.f32 %v62, %v78
    %v83 = vadd.f32 %v63, %v78
    %v84 = vadd.f32 %v64, %v78
    %v85 = vadd.f32 %v65, %v78
    %v86 = vadd.f32 %v66, %v78
    %v87 = vadd.f32 %v67, %v78
    %v88 = vadd.f32 %v68, %v78
    %v89 = vadd.f32 %v69, %v78
    %v90 = vadd.f32 %v70, %v78
    %v91 = vadd.f32 %v71, %v78
    %v92 = vadd.f32 %v72, %v78
    %v93 = vadd.f32 %v73, %v78
    %v94 = vadd.f32 %v74, %v78
    %v95 = vadd.f32 %v75, %v78
    %v96 = vld [vmem:[%s3] sm:$0xf]
    %v97 = vld [vmem:[%s3 + $0x4] sm:$0xf]
    %v98 = vld [vmem:[%s3 + $0x8] sm:$0xf]
    %v99 = vld [vmem:[%s3 + $0xc] sm:$0xf]
    %v100 = vld [vmem:[%s3 + $0x10] sm:$0xf]
    %v101 = vld [vmem:[%s3 + $0x14] sm:$0xf]
    %v102 = vld [vmem:[%s3 + $0x18] sm:$0xf]
    %v103 = vld [vmem:[%s3 + $0x1c] sm:$0xf]
    %v104 = vld [vmem:[%s3 + $0x20] sm:$0xf]
    %v105 = vld [vmem:[%s3 + $0x24] sm:$0xf]
    %v106 = vld [vmem:[%s3 + $0x28] sm:$0xf]
    %v107 = vld [vmem:[%s3 + $0x2c] sm:$0xf]
    %v108 = vld [vmem:[%s3 + $0x30] sm:$0xf]
    %v109 = vld [vmem:[%s3 + $0x34] sm:$0xf]
    %v110 = vld [vmem:[%s3 + $0x38] sm:$0xf]
    %v111 = vld [vmem:[%s3 + $0x3c] sm:$0xf]
    %v112 = vunpack.c.l.bf16 %v96
    %v113 = vunpack.c.l.bf16 %v97
    %v114 = vunpack.c.l.bf16 %v98
    %v115 = vunpack.c.l.bf16 %v99
    %v116 = vunpack.c.l.bf16 %v100
    %v117 = vunpack.c.l.bf16 %v101
    %v118 = vunpack.c.l.bf16 %v102
    %v119 = vunpack.c.l.bf16 %v103
    %v120 = vunpack.c.l.bf16 %v104
    %v121 = vunpack.c.l.bf16 %v105
    %v122 = vunpack.c.l.bf16 %v106
    %v123 = vunpack.c.l.bf16 %v107
    %v124 = vunpack.c.l.bf16 %v108
    %v125 = vunpack.c.l.bf16 %v109
    %v126 = vunpack.c.l.bf16 %v110
    %v127 = vunpack.c.l.bf16 %v111
    %v128 = vld [vmem:[%s4] sm:$0x1]
    %v130 = vperm.slane %v128, 0
    %v132 = vmul.f32 %v112, %v130
    %v133 = vmul.f32 %v113, %v130
    %v134 = vmul.f32 %v114, %v130
    %v135 = vmul.f32 %v115, %v130
    %v136 = vmul.f32 %v116, %v130
    %v137 = vmul.f32 %v117, %v130
    %v138 = vmul.f32 %v118, %v130
    %v139 = vmul.f32 %v119, %v130
    %v140 = vmul.f32 %v120, %v130
    %v141 = vmul.f32 %v121, %v130
    %v142 = vmul.f32 %v122, %v130
    %v143 = vmul.f32 %v123, %v130
    %v144 = vmul.f32 %v124, %v130
    %v145 = vmul.f32 %v125, %v130
    %v146 = vmul.f32 %v126, %v130
    %v147 = vmul.f32 %v127, %v130
    %v148 = vld [vmem:[%s5] sm:$0x1]
    %v150 = vperm.slane %v148, 0
    %v152 = vadd.f32 %v132, %v150
    %v153 = vadd.f32 %v133, %v150
    %v154 = vadd.f32 %v134, %v150
    %v155 = vadd.f32 %v135, %v150
    %v156 = vadd.f32 %v136, %v150
    %v157 = vadd.f32 %v137, %v150
    %v158 = vadd.f32 %v138, %v150
    %v159 = vadd.f32 %v139, %v150
    %v160 = vadd.f32 %v140, %v150
    %v161 = vadd.f32 %v141, %v150
    %v162 = vadd.f32 %v142, %v150
    %v163 = vadd.f32 %v143, %v150
    %v164 = vadd.f32 %v144, %v150
    %v165 = vadd.f32 %v145, %v150
    %v166 = vadd.f32 %v146, %v150
    %v167 = vadd.f32 %v147, %v150
    %v168 = vadd.f32 %v80, %v152
    %v169 = vadd.f32 %v81, %v153
    %v170 = vadd.f32 %v82, %v154
    %v171 = vadd.f32 %v83, %v155
    %v172 = vadd.f32 %v84, %v156
    %v173 = vadd.f32 %v85, %v157
    %v174 = vadd.f32 %v86, %v158
    %v175 = vadd.f32 %v87, %v159
    %v176 = vadd.f32 %v88, %v160
    %v177 = vadd.f32 %v89, %v161
    %v178 = vadd.f32 %v90, %v162
    %v179 = vadd.f32 %v91, %v163
    %v180 = vadd.f32 %v92, %v164
    %v181 = vadd.f32 %v93, %v165
    %v182 = vadd.f32 %v94, %v166
    %v183 = vadd.f32 %v95, %v167
    %v184 = vmax.f32 %v168, 0.0
    %v185 = vmax.f32 %v169, 0.0
    %v186 = vmax.f32 %v170, 0.0
    %v187 = vmax.f32 %v171, 0.0
    %v188 = vmax.f32 %v172, 0.0
    %v189 = vmax.f32 %v173, 0.0
    %v190 = vmax.f32 %v174, 0.0
    %v191 = vmax.f32 %v175, 0.0
    %v192 = vmax.f32 %v176, 0.0
    %v193 = vmax.f32 %v177, 0.0
    %v194 = vmax.f32 %v178, 0.0
    %v195 = vmax.f32 %v179, 0.0
    %v196 = vmax.f32 %v180, 0.0
    %v197 = vmax.f32 %v181, 0.0
    %v198 = vmax.f32 %v182, 0.0
    %v199 = vmax.f32 %v183, 0.0
    %200 = vst [vmem:[#allocation2] sm:$0xff] %v184
    %201 = vst [vmem:[#allocation2 + $0x8] sm:$0xff] %v185
    %202 = vst [vmem:[#allocation2 + $0x10] sm:$0xff] %v186
    %203 = vst [vmem:[#allocation2 + $0x18] sm:$0xff] %v187
    %204 = vst [vmem:[#allocation2 + $0x20] sm:$0xff] %v188
    %205 = vst [vmem:[#allocation2 + $0x28] sm:$0xff] %v189
    %206 = vst [vmem:[#allocation2 + $0x30] sm:$0xff] %v190
    %207 = vst [vmem:[#allocation2 + $0x38] sm:$0xff] %v191
    %208 = vst [vmem:[#allocation2 + $0x40] sm:$0xff] %v192
    %209 = vst [vmem:[#allocation2 + $0x48] sm:$0xff] %v193
    %210 = vst [vmem:[#allocation2 + $0x50] sm:$0xff] %v194
    %211 = vst [vmem:[#allocation2 + $0x58] sm:$0xff] %v195
    %212 = vst [vmem:[#allocation2 + $0x60] sm:$0xff] %v196
    %213 = vst [vmem:[#allocation2 + $0x68] sm:$0xff] %v197
    %214 = vst [vmem:[#allocation2 + $0x70] sm:$0xff] %v198
    %215 = vst [vmem:[#allocation2 + $0x78] sm:$0xff] %v199
    // Predicated region
    $region26: #{basic_block_forward.5} parent=1 // pred_check
      _
    $region27: #{basic_block_forward.5} parent=1 // pred_check_branch
      %217 = sbr.rel (0) target = $region29
    $region28: #{basic_block_forward.5} parent=1 // pred_region
      %219 = vsyncadd [#allocation3], 0
      %s220 = sshll.u32 [#allocation2], 4
      %s221 = int_to_ptr.vmem [resolvable:$true] %s220
      %s222 = sshll.u32 %s6, 4
      %s223 = int_to_ptr.hbm [resolvable:$true] %s222
      %228 = dma.vmem_to_hbm [thread:$0]  %s221, 2048, %s223, [#allocation3], 128, 128, 8
    $region29: #{basic_block_forward.5} parent=1 // pred_fallthru
      _
    // Predicated region
    $region30: #{basic_block_forward.5} parent=1 // pred_check
      _
    $region31: #{basic_block_forward.5} parent=1 // pred_check_branch
      %230 = sbr.rel (0) target = $region33
    $region32: #{basic_block_forward.5} parent=1 // pred_region
      %232 = dma.done [#allocation3], 2048
    $region33: #{basic_block_forward.5} parent=1 // pred_fallthru
      _
    %233 = vsyncpa [#allocation3], 1

</llo_original>
